<compile_context>
chip_gen: v5e
topology: v5e:2x2
jax: 0.10.0
libtpu: 0.0.40
codegen_flags: <defaults>
</compile_context>

<pallas_src>
import jax
import jax.numpy as jnp
from jax.experimental import pallas as pl
from jax.experimental.pallas import tpu as pltpu

C_IN = 160
C_OUT = 960
TILE_COUT = 480          # 2 row-tiles: matches v7x core count, pipelines on v5e/v6e
BN_EPS = 1e-3


def bn_add_conv1x1_kernel(x_ref, skip_ref, gamma_ref, beta_ref, w_ref, o_ref):
    # x_ref, skip_ref : (C_IN, M) f32   channels on sublanes, pixels on lanes
    # gamma_ref, beta_ref : (C_IN, 1) f32 sublane vectors
    # w_ref : (TILE_COUT, C_IN) bf16    pre-staged conv weight row-tile
    # o_ref : (TILE_COUT, M) f32
    x = x_ref[...]
    m = x.shape[-1]
    inv_m = jnp.float32(1.0 / m)

    # Training-mode BatchNorm: per-channel biased batch statistics, computed
    # in-VMEM (two-pass variance for stability; XLU lane reductions are off
    # the VPU/MXU critical slots).  Recomputed per grid step on purpose: it is
    # tiny and keeps the "parallel" C_OUT axis free of cross-step state.
    mean = jnp.sum(x, axis=-1, keepdims=True) * inv_m              # (C_IN, 1)
    centered = x - mean
    var = jnp.sum(centered * centered, axis=-1, keepdims=True) * inv_m
    inv_std = jax.lax.rsqrt(var + BN_EPS)                          # EUP
    scale = gamma_ref[...] * inv_std                               # (C_IN, 1)

    # BN (folded scale/shift) + residual add, then 1x1 conv as an MXU matmul.
    y = centered * scale + beta_ref[...] + skip_ref[...]           # (C_IN, M) f32
    o_ref[...] = jnp.dot(w_ref[...], y.astype(jnp.bfloat16),
                         preferred_element_type=jnp.float32)       # (TILE_COUT, M)


def bn_add_conv1x1(x178, x165, gamma, beta, w_mat_bf16):
    """x178, x165: (1, C_IN, H, W) f32.  w_mat_bf16: (C_OUT, C_IN) bf16 pre-staged weight."""
    N, C, H, W = x178.shape
    assert N == 1 and C == C_IN, "free (C, M) reshape requires N == 1"
    # TODO(synk): for N > 1 add a batch grid axis (or fall back to an NHWC path).
    M = H * W
    assert C_OUT % TILE_COUT == 0
    n_tiles = C_OUT // TILE_COUT

    x_mat = x178.reshape(C_IN, M)      # free reshape, no transpose
    s_mat = x165.reshape(C_IN, M)      # free reshape, no transpose

    flops = 2 * M * C_IN * C_OUT + n_tiles * 6 * M * C_IN
    bytes_accessed = (4 * (2 * C_IN * M + 2 * C_IN + C_OUT * M)
                      + 2 * C_OUT * C_IN)

    out_mat = pl.pallas_call(
        bn_add_conv1x1_kernel,
        out_shape=jax.ShapeDtypeStruct((C_OUT, M), jnp.float32),
        grid=(n_tiles,),
        in_specs=[
            pl.BlockSpec((C_IN, M), lambda j: (0, 0)),        # x: resident across steps
            pl.BlockSpec((C_IN, M), lambda j: (0, 0)),        # skip
            pl.BlockSpec((C_IN, 1), lambda j: (0, 0)),        # gamma
            pl.BlockSpec((C_IN, 1), lambda j: (0, 0)),        # beta
            pl.BlockSpec((TILE_COUT, C_IN), lambda j: (j, 0)),  # bf16 weight row-tile
        ],
        out_specs=pl.BlockSpec((TILE_COUT, M), lambda j: (j, 0)),
        compiler_params=pltpu.CompilerParams(
            dimension_semantics=("parallel",)),
        cost_estimate=pl.CostEstimate(
            flops=flops, transcendentals=n_tiles * C_IN,
            bytes_accessed=bytes_accessed),
    )(x_mat, s_mat, gamma.reshape(C_IN, 1), beta.reshape(C_IN, 1), w_mat_bf16)

    # Free reshape back to NCHW.
    return out_mat.reshape(1, C_OUT, H, W)


if __name__ == "__main__":
    key = jax.random.PRNGKey(0)
    k1, k2, k3, k4, k5 = jax.random.split(key, 5)

    N, H, W = 1, 14, 14
    x178 = jax.random.normal(k1, (N, C_IN, H, W), dtype=jnp.float32)
    x165 = jax.random.normal(k2, (N, C_IN, H, W), dtype=jnp.float32)

    # Deterministic synthetic parameters (shapes match the PyTorch module).
    gamma = 1.0 + 0.1 * jax.random.normal(k3, (C_IN,), dtype=jnp.float32)
    beta = 0.1 * jax.random.normal(k4, (C_IN,), dtype=jnp.float32)
    conv_w = jax.random.normal(k5, (C_OUT, C_IN, 1, 1), dtype=jnp.float32) * (1.0 / jnp.sqrt(C_IN))

    # Static parameter: stage the 1x1 conv weight ONCE as a bf16 (C_OUT, C_IN)
    # matrix -- halves the dominant HBM transfer; done outside the per-call path.
    w_mat_bf16 = conv_w[:, :, 0, 0].astype(jnp.bfloat16)

    run = jax.jit(bn_add_conv1x1)
    out = run(x178, x165, gamma, beta, w_mat_bf16)
    out = jax.block_until_ready(out)

    # Sanity check against a pure-JAX f32 reference (training-mode BN + conv).
    mean = jnp.mean(x178, axis=(0, 2, 3), keepdims=True)
    var = jnp.mean((x178 - mean) ** 2, axis=(0, 2, 3), keepdims=True)
    bn = (x178 - mean) / jnp.sqrt(var + BN_EPS) * gamma[None, :, None, None] + beta[None, :, None, None]
    ref = jax.lax.conv_general_dilated(
        bn + x165, conv_w, window_strides=(1, 1), padding="VALID",
        dimension_numbers=("NCHW", "OIHW", "NCHW"))
    assert out.shape == (N, C_OUT, H, W)
    max_abs_err = float(jnp.max(jnp.abs(out - ref)))
    rel_to_max = max_abs_err / float(jnp.max(jnp.abs(ref)))
    # bf16 matmul operands + f32 accumulation: expect ~1e-2 max-abs error at K=160.
    assert max_abs_err < 5e-2 and rel_to_max < 1e-2, (max_abs_err, rel_to_max)

    print("KERNEL_OK")
</pallas_src>

<mosaic_0001>
module attributes {stable_mosaic.version = 11 : i64} {
  func.func @bn_add_conv1x1_kernel(%arg0: i32, %arg1: memref<160x196xf32, #tpu.memory_space<vmem>>, %arg2: memref<160x196xf32, #tpu.memory_space<vmem>>, %arg3: memref<160x1xf32, #tpu.memory_space<vmem>>, %arg4: memref<160x1xf32, #tpu.memory_space<vmem>>, %arg5: memref<480x160xbf16, #tpu.memory_space<vmem>>, %arg6: memref<480x196xf32, #tpu.memory_space<vmem>>) attributes {dimension_semantics = [#tpu.dimension_semantics<parallel>], iteration_bounds = array<i64: 2>, scalar_prefetch = 0 : i64, scratch_operands = 0 : i64, tpu.core_type = #tpu.core_type<tc>, window_params = [{pipeline_mode = #tpu.pipeline_mode<synchronous>, transform_indices = @transform_0, window_bounds = array<i64: 160, 196>}, {pipeline_mode = #tpu.pipeline_mode<synchronous>, transform_indices = @transform_1, window_bounds = array<i64: 160, 196>}, {pipeline_mode = #tpu.pipeline_mode<synchronous>, transform_indices = @transform_2, window_bounds = array<i64: 160, 1>}, {pipeline_mode = #tpu.pipeline_mode<synchronous>, transform_indices = @transform_3, window_bounds = array<i64: 160, 1>}, {transform_indices = @transform_4, window_bounds = array<i64: 480, 160>}, {transform_indices = @transform_5, window_bounds = array<i64: 480, 196>}]} {
    %c0 = arith.constant 0 : index
    %c0_0 = arith.constant 0 : index
    %0 = vector.load %arg1[%c0, %c0_0] : memref<160x196xf32, #tpu.memory_space<vmem>>, vector<160x196xf32>
    %cst = arith.constant dense<0.000000e+00> : vector<160xf32>
    %1 = vector.multi_reduction <add>, %0, %cst [1] : vector<160x196xf32> to vector<160xf32>
    %2 = vector.shape_cast %1 : vector<160xf32> to vector<160x1xf32>
    %cst_1 = arith.constant 0.00510204071 : f32
    %3 = vector.broadcast %cst_1 : f32 to vector<160x1xf32>
    %4 = arith.mulf %2, %3 : vector<160x1xf32>
    %5 = vector.broadcast %4 : vector<160x1xf32> to vector<160x196xf32>
    %6 = arith.subf %0, %5 : vector<160x196xf32>
    %7 = arith.mulf %6, %6 : vector<160x196xf32>
    %cst_2 = arith.constant dense<0.000000e+00> : vector<160xf32>
    %8 = vector.multi_reduction <add>, %7, %cst_2 [1] : vector<160x196xf32> to vector<160xf32>
    %9 = vector.shape_cast %8 : vector<160xf32> to vector<160x1xf32>
    %cst_3 = arith.constant 0.00510204071 : f32
    %10 = vector.broadcast %cst_3 : f32 to vector<160x1xf32>
    %11 = arith.mulf %9, %10 : vector<160x1xf32>
    %cst_4 = arith.constant 1.000000e-03 : f32
    %12 = vector.broadcast %cst_4 : f32 to vector<160x1xf32>
    %13 = arith.addf %11, %12 : vector<160x1xf32>
    %14 = math.rsqrt %13 : vector<160x1xf32>
    %c0_5 = arith.constant 0 : index
    %c0_6 = arith.constant 0 : index
    %15 = vector.load %arg3[%c0_5, %c0_6] : memref<160x1xf32, #tpu.memory_space<vmem>>, vector<160x1xf32>
    %16 = arith.mulf %15, %14 : vector<160x1xf32>
    %17 = vector.broadcast %16 : vector<160x1xf32> to vector<160x196xf32>
    %18 = arith.mulf %6, %17 : vector<160x196xf32>
    %c0_7 = arith.constant 0 : index
    %c0_8 = arith.constant 0 : index
    %19 = vector.load %arg4[%c0_7, %c0_8] : memref<160x1xf32, #tpu.memory_space<vmem>>, vector<160x1xf32>
    %20 = vector.broadcast %19 : vector<160x1xf32> to vector<160x196xf32>
    %21 = arith.addf %18, %20 : vector<160x196xf32>
    %c0_9 = arith.constant 0 : index
    %c0_10 = arith.constant 0 : index
    %22 = vector.load %arg2[%c0_9, %c0_10] : memref<160x196xf32, #tpu.memory_space<vmem>>, vector<160x196xf32>
    %23 = arith.addf %21, %22 : vector<160x196xf32>
    %c0_11 = arith.constant 0 : index
    %c0_12 = arith.constant 0 : index
    %24 = vector.load %arg5[%c0_11, %c0_12] : memref<480x160xbf16, #tpu.memory_space<vmem>>, vector<480x160xbf16>
    %25 = arith.truncf %23 : vector<160x196xf32> to vector<160x196xbf16>
    %cst_13 = arith.constant dense<0.000000e+00> : vector<480x196xf32>
    %26 = tpu.matmul %24, %25, %cst_13 {dimension_numbers = #tpu.dot_dimension_numbers<[1], [0], [0], [1], [0, 0, 1, 1], [], []>} : vector<480x160xbf16>, vector<160x196xbf16>, vector<480x196xf32> -> vector<480x196xf32>
    %c0_14 = arith.constant 0 : index
    %c0_15 = arith.constant 0 : index
    %27 = vector.load %arg6[%c0_14, %c0_15] : memref<480x196xf32, #tpu.memory_space<vmem>>, vector<480x196xf32>
    tpu.vector_store %arg6[%c0_14, %c0_15], %26 {strides = array<i32>} : memref<480x196xf32, #tpu.memory_space<vmem>>, vector<480x196xf32>,
    return
  }
  func.func @transform_0(%arg0: i32) -> (i32, i32) {
    %c0_i32 = arith.constant 0 : i32
    %c0_i32_0 = arith.constant 0 : i32
    %c0_i32_1 = arith.constant 0 : i32
    return %c0_i32, %c0_i32_0 : i32, i32
  }
  func.func @transform_1(%arg0: i32) -> (i32, i32) {
    %c0_i32 = arith.constant 0 : i32
    %c0_i32_0 = arith.constant 0 : i32
    %c0_i32_1 = arith.constant 0 : i32
    return %c0_i32, %c0_i32_0 : i32, i32
  }
  func.func @transform_2(%arg0: i32) -> (i32, i32) {
    %c0_i32 = arith.constant 0 : i32
    %c0_i32_0 = arith.constant 0 : i32
    %c0_i32_1 = arith.constant 0 : i32
    return %c0_i32, %c0_i32_0 : i32, i32
  }
  func.func @transform_3(%arg0: i32) -> (i32, i32) {
    %c0_i32 = arith.constant 0 : i32
    %c0_i32_0 = arith.constant 0 : i32
    %c0_i32_1 = arith.constant 0 : i32
    return %c0_i32, %c0_i32_0 : i32, i32
  }
  func.func @transform_4(%arg0: i32) -> (i32, i32) {
    %c0_i32 = arith.constant 0 : i32
    %c0_i32_0 = arith.constant 0 : i32
    return %arg0, %c0_i32 : i32, i32
  }
  func.func @transform_5(%arg0: i32) -> (i32, i32) {
    %c0_i32 = arith.constant 0 : i32
    %c0_i32_0 = arith.constant 0 : i32
    return %arg0, %c0_i32 : i32, i32
  }
}

</mosaic_0001>

<llo_original>
// kernel: bn_add_conv1x1.1
$region0: #{bn_add_conv1x1.1}
  #allocation0 [shape = 'u32[]', space=smem, size = 0x4, offset = 0x4, fixed_abs, tag = 'smem constant byte address 0x4 - core index']
  #allocation1 [shape = 'u32[72,128]{1,0:T(1,128)}', space=vmem, size = 0x9000, scoped, tag = 'internal scratch']
  %s0 = inlined_call_operand.vmem [shape: f32[160,196], index: 0, kind: input, shape index: {}]
  %s1 = inlined_call_operand.vmem [shape: f32[160,196], index: 1, kind: input, shape index: {}]
  %s2 = inlined_call_operand.vmem [shape: f32[160,1], index: 2, kind: input, shape index: {}]
  %s3 = inlined_call_operand.vmem [shape: f32[160,1], index: 3, kind: input, shape index: {}]
  %s4 = inlined_call_operand.vmem [shape: bf16[960,160], index: 4, kind: input, shape index: {}]
  %s5 = inlined_call_operand.vmem [shape: f32[960,196], index: 5, kind: output, shape index: {}]
  %s6 = sld [smem:[#allocation0]]
  $region53: #{bn_add_conv1x1.1} parent=0
    _
  %s8 = ssub.s32 1, %s6
  %s9 = scalar_select 0, %s8, %s6
  loop: start=0, step=1, limit=4
  $region2: #{bn_add_conv1x1.1} parent=0 // loop_pre_header
    _
  $region3: #{bn_add_conv1x1.1} parent=0 // loop_header
    %s11 = sphi 0, %s15
    %p12 = scmp.ge.s32.totalorder %s11, 4
    %s19 = sphi 0, %s19
    %s21 = sphi 0, %s19
    %s22 = sphi 0, %s21
    %s36 = sphi 0, %s22
    %s40 = sphi 0, %s40
    %s42 = sphi 0, %s40
    %s43 = sphi 0, %s42
    %s57 = sphi 0, %s43
    %s61 = sphi 0, %s61
    %s63 = sphi 0, %s61
    %s64 = sphi 0, %s63
    %s78 = sphi 0, %s64
    %s82 = sphi 0, %s82
    %s84 = sphi 0, %s82
    %s85 = sphi 0, %s84
    %s99 = sphi 0, %s85
    %s105 = sphi 0, %s107
    %s108 = sphi 0, %s105
    %s109 = sphi 0, %s108
    %s125 = sphi 0, %s109
    %s131 = sphi 0, %s133
    %s134 = sphi 0, %s131
    %s135 = sphi 0, %s134
    %s151 = sphi 0, %s135
  $region4: #{bn_add_conv1x1.1} parent=0 // loop_header_branch
    %14 = sbr.rel (%p12) target = $region8
  $region5: #{bn_add_conv1x1.1} parent=0 // loop_body
    %s16 = ssub.s32 %s11, 1
    %s17 = ssub.s32 %s11, 2
    %s18 = sadd.s32 %s11, 1
    %s20 = sadd.s32 %s19, 1
    %p23 = scmp.eq.s32.totalorder %s11, 1
    %p24 = scmp.ne.s32.totalorder %s19, %s21
    %p25 = scmp.eq.s32.totalorder %s11, 0
    %p26 = por %p24, %p25
    %p27 = scmp.ne.s32.totalorder %s19, %s21
    %p28 = scmp.eq.s32.totalorder %s16, 1
    %p29 = por %p27, %p28
    %p30 = scmp.ne.s32.totalorder %s21, %s22
    %p31 = scmp.eq.s32.totalorder %s16, 0
    %p32 = por %p30, %p31
    %p33 = scmp.ne.s32.totalorder %s21, %s22
    %p34 = scmp.eq.s32.totalorder %s17, 1
    %p35 = por %p33, %p34
    %p37 = scmp.ne.s32.totalorder %s22, %s36
    %p38 = scmp.eq.s32.totalorder %s17, 0
    %p39 = por %p37, %p38
    %s41 = sadd.s32 %s40, 1
    %p44 = scmp.eq.s32.totalorder %s11, 1
    %p45 = scmp.ne.s32.totalorder %s40, %s42
    %p46 = scmp.eq.s32.totalorder %s11, 0
    %p47 = por %p45, %p46
    %p48 = scmp.ne.s32.totalorder %s40, %s42
    %p49 = scmp.eq.s32.totalorder %s16, 1
    %p50 = por %p48, %p49
    %p51 = scmp.ne.s32.totalorder %s42, %s43
    %p52 = scmp.eq.s32.totalorder %s16, 0
    %p53 = por %p51, %p52
    %p54 = scmp.ne.s32.totalorder %s42, %s43
    %p55 = scmp.eq.s32.totalorder %s17, 1
    %p56 = por %p54, %p55
    %p58 = scmp.ne.s32.totalorder %s43, %s57
    %p59 = scmp.eq.s32.totalorder %s17, 0
    %p60 = por %p58, %p59
    %s62 = sadd.s32 %s61, 1
    %p65 = scmp.eq.s32.totalorder %s11, 1
    %p66 = scmp.ne.s32.totalorder %s61, %s63
    %p67 = scmp.eq.s32.totalorder %s11, 0
    %p68 = por %p66, %p67
    %p69 = scmp.ne.s32.totalorder %s61, %s63
    %p70 = scmp.eq.s32.totalorder %s16, 1
    %p71 = por %p69, %p70
    %p72 = scmp.ne.s32.totalorder %s63, %s64
    %p73 = scmp.eq.s32.totalorder %s16, 0
    %p74 = por %p72, %p73
    %p75 = scmp.ne.s32.totalorder %s63, %s64
    %p76 = scmp.eq.s32.totalorder %s17, 1
    %p77 = por %p75, %p76
    %p79 = scmp.ne.s32.totalorder %s64, %s78
    %p80 = scmp.eq.s32.totalorder %s17, 0
    %p81 = por %p79, %p80
    %s83 = sadd.s32 %s82, 1
    %p86 = scmp.eq.s32.totalorder %s11, 1
    %p87 = scmp.ne.s32.totalorder %s82, %s84
    %p88 = scmp.eq.s32.totalorder %s11, 0
    %p89 = por %p87, %p88
    %p90 = scmp.ne.s32.totalorder %s82, %s84
    %p91 = scmp.eq.s32.totalorder %s16, 1
    %p92 = por %p90, %p91
    %p93 = scmp.ne.s32.totalorder %s84, %s85
    %p94 = scmp.eq.s32.totalorder %s16, 0
    %p95 = por %p93, %p94
    %p96 = scmp.ne.s32.totalorder %s84, %s85
    %p97 = scmp.eq.s32.totalorder %s17, 1
    %p98 = por %p96, %p97
    %p100 = scmp.ne.s32.totalorder %s85, %s99
    %p101 = scmp.eq.s32.totalorder %s17, 0
    %p102 = por %p100, %p101
    %s103 = ssub.s32 %s11, %s18
    %p104 = scmp.eq.s32.totalorder %s103, 0
    %s106 = sadd.s32 %s105, 1
    %s107 = scalar_select %p104, %s105, %s106
    %p110 = pneg %p104
    %p111 = scmp.eq.s32.totalorder %s11, 1
    %p112 = por %p110, %p111
    %p113 = scmp.ne.s32.totalorder %s105, %s108
    %p114 = scmp.eq.s32.totalorder %s11, 0
    %p115 = por %p113, %p114
    %p116 = scmp.ne.s32.totalorder %s105, %s108
    %p117 = scmp.eq.s32.totalorder %s16, 1
    %p118 = por %p116, %p117
    %p119 = scmp.ne.s32.totalorder %s108, %s109
    %p120 = scmp.eq.s32.totalorder %s16, 0
    %p121 = por %p119, %p120
    %p122 = scmp.ne.s32.totalorder %s108, %s109
    %p123 = scmp.eq.s32.totalorder %s17, 1
    %p124 = por %p122, %p123
    %p126 = scmp.ne.s32.totalorder %s109, %s125
    %p127 = scmp.eq.s32.totalorder %s17, 0
    %p128 = por %p126, %p127
    %s129 = ssub.s32 %s11, %s18
    %p130 = scmp.eq.s32.totalorder %s129, 0
    %s132 = sadd.s32 %s131, 1
    %s133 = scalar_select %p130, %s131, %s132
    %p136 = pneg %p130
    %p137 = scmp.eq.s32.totalorder %s11, 1
    %p138 = por %p136, %p137
    %p139 = scmp.ne.s32.totalorder %s131, %s134
    %p140 = scmp.eq.s32.totalorder %s11, 0
    %p141 = por %p139, %p140
    %p142 = scmp.ne.s32.totalorder %s131, %s134
    %p143 = scmp.eq.s32.totalorder %s16, 1
    %p144 = por %p142, %p143
    %p145 = scmp.ne.s32.totalorder %s134, %s135
    %p146 = scmp.eq.s32.totalorder %s16, 0
    %p147 = por %p145, %p146
    %p148 = scmp.ne.s32.totalorder %s134, %s135
    %p149 = scmp.eq.s32.totalorder %s17, 1
    %p150 = por %p148, %p149
    %p152 = scmp.ne.s32.totalorder %s135, %s151
    %p153 = scmp.eq.s32.totalorder %s17, 0
    %p154 = por %p152, %p153
    %p155 = scmp.le.s32.totalorder 1, %s11
    %p156 = scmp.lt.s32.totalorder %s11, 3
    %p157 = pnand %p155, %p156
    %p158 = pneg %p157
    // Predicated region
    $region9: #{bn_add_conv1x1.1} parent=5 // pred_check
      _
    $region10: #{bn_add_conv1x1.1} parent=5 // pred_check_branch
      %160 = sbr.rel (%p157) target = $region12
    $region11: #{bn_add_conv1x1.1} parent=5 // pred_region
      %s161 = ssub.s32 %s11, 1
      // Predicated region
      $region13: #{bn_add_conv1x1.1} parent=11 // pred_check
        %p162 = pneg %p32
      $region14: #{bn_add_conv1x1.1} parent=11 // pred_check_branch
        %164 = sbr.rel (%p162) target = $region16
      $region15: #{bn_add_conv1x1.1} parent=11 // pred_region
        _
      $region16: #{bn_add_conv1x1.1} parent=11 // pred_fallthru
        _
      // Predicated region
      $region17: #{bn_add_conv1x1.1} parent=11 // pred_check
        %p165 = pneg %p53
      $region18: #{bn_add_conv1x1.1} parent=11 // pred_check_branch
        %167 = sbr.rel (%p165) target = $region20
      $region19: #{bn_add_conv1x1.1} parent=11 // pred_region
        _
      $region20: #{bn_add_conv1x1.1} parent=11 // pred_fallthru
        _
      // Predicated region
      $region21: #{bn_add_conv1x1.1} parent=11 // pred_check
        %p168 = pneg %p74
      $region22: #{bn_add_conv1x1.1} parent=11 // pred_check_branch
        %170 = sbr.rel (%p168) target = $region24
      $region23: #{bn_add_conv1x1.1} parent=11 // pred_region
        _
      $region24: #{bn_add_conv1x1.1} parent=11 // pred_fallthru
        _
      // Predicated region
      $region25: #{bn_add_conv1x1.1} parent=11 // pred_check
        %p171 = pneg %p95
      $region26: #{bn_add_conv1x1.1} parent=11 // pred_check_branch
        %173 = sbr.rel (%p171) target = $region28
      $region27: #{bn_add_conv1x1.1} parent=11 // pred_region
        _
      $region28: #{bn_add_conv1x1.1} parent=11 // pred_fallthru
        _
    $region12: #{bn_add_conv1x1.1} parent=5 // pred_fallthru
      _
    %p174 = scmp.lt.s32.totalorder %s11, 2
    // Predicated region
    $region29: #{bn_add_conv1x1.1} parent=5 // pred_check
      %p175 = pneg %p174
    $region30: #{bn_add_conv1x1.1} parent=5 // pred_check_branch
      %177 = sbr.rel (%p175) target = $region32
    $region31: #{bn_add_conv1x1.1} parent=5 // pred_region
      // Predicated region
      $region33: #{bn_add_conv1x1.1} parent=31 // pred_check
        %p178 = pneg %p115
      $region34: #{bn_add_conv1x1.1} parent=31 // pred_check_branch
        %180 = sbr.rel (%p178) target = $region36
      $region35: #{bn_add_conv1x1.1} parent=31 // pred_region
        %s181 = smul.u32 60, %s11
        %p182 = scmp.lt.s32.totalorder %s181, 119
        %s183 = scalar_select %p182, %s181, 119
        %s184 = smul.addr %s183, 2
        %s185 = smul.addr %s184, 4
        %s186 = scalar_lea.vmem %s4, %s185
        %s187 = smul.u32 60, %s11
      $region36: #{bn_add_conv1x1.1} parent=31 // pred_fallthru
        _
    $region32: #{bn_add_conv1x1.1} parent=5 // pred_fallthru
      _
    %p188 = scmp.le.s32.totalorder 1, %s11
    %p189 = scmp.lt.s32.totalorder %s11, 3
    %p190 = pnand %p188, %p189
    %p191 = pneg %p190
    // Predicated region
    $region37: #{bn_add_conv1x1.1} parent=5 // pred_check
      _
    $region38: #{bn_add_conv1x1.1} parent=5 // pred_check_branch
      %193 = sbr.rel (%p190) target = $region40
    $region39: #{bn_add_conv1x1.1} parent=5 // pred_region
      %s194 = ssub.s32 %s11, 1
      %p195 = pneg %p32
      %p196 = pneg %p29
      %p197 = pneg %p53
      %p198 = pneg %p50
      %p199 = pneg %p74
      %p200 = pneg %p71
      %p201 = pneg %p95
      %p202 = pneg %p92
      %s203 = smul.u32 60, %s16
      %p204 = scmp.lt.s32.totalorder %s203, 119
      %s205 = scalar_select %p204, %s203, 119
      %s206 = smul.addr %s205, 2
      %s207 = smul.addr %s206, 4
      %s208 = scalar_lea.vmem %s4, %s207
      %p209 = pneg %p121
      %p210 = pneg %p118
      %p211 = pneg %p147
      %p212 = pneg %p144
      %s213 = smul.u32 60, %s16
      %p214 = scmp.lt.s32.totalorder %s213, 119
      %s215 = scalar_select %p214, %s213, 119
      %s216 = smul.addr %s215, 2
      %s217 = smul.addr %s216, 8
      %s218 = scalar_lea.vmem %s5, %s217
      %s219 = smul.u32 60, %s16
      %p220 = scmp.lt.s32.totalorder %s219, 119
      %s221 = scalar_select %p220, %s219, 119
      %s222 = smul.addr %s221, 2
      %s223 = smul.addr %s222, 4
      %s224 = scalar_lea.vmem %s4, %s223
      %s225 = smul.u32 60, %s16
      %s226 = smul.u32 60, %s16
      %p227 = scmp.lt.s32.totalorder %s226, 119
      %s228 = scalar_select %p227, %s226, 119
      %s229 = smul.addr %s228, 2
      %s230 = smul.addr %s229, 8
      %s231 = scalar_lea.vmem %s5, %s230
      %s232 = smul.u32 60, %s16
      %v234 = vld [vmem:[%s0] sm:$0xff]
      %v235 = vld [vmem:[%s0 + $0x8] sm:$0xff]
      %v236 = vld [vmem:[%s0 + $0x10] sm:$0xff]
      %v237 = vld [vmem:[%s0 + $0x18] sm:$0xff]
      %v238 = vld [vmem:[%s0 + $0x20] sm:$0xff]
      %v239 = vld [vmem:[%s0 + $0x28] sm:$0xff]
      %v240 = vld [vmem:[%s0 + $0x30] sm:$0xff]
      %v241 = vld [vmem:[%s0 + $0x38] sm:$0xff]
      %v242 = vld [vmem:[%s0 + $0x40] sm:$0xff]
      %v243 = vld [vmem:[%s0 + $0x48] sm:$0xff]
      %v244 = vld [vmem:[%s0 + $0x50] sm:$0xff]
      %v245 = vld [vmem:[%s0 + $0x58] sm:$0xff]
      %v246 = vld [vmem:[%s0 + $0x60] sm:$0xff]
      %v247 = vld [vmem:[%s0 + $0x68] sm:$0xff]
      %v248 = vld [vmem:[%s0 + $0x70] sm:$0xff]
      %v249 = vld [vmem:[%s0 + $0x78] sm:$0xff]
      %v250 = vld [vmem:[%s0 + $0x80] sm:$0xff]
      %v251 = vld [vmem:[%s0 + $0x88] sm:$0xff]
      %v252 = vld [vmem:[%s0 + $0x90] sm:$0xff]
      %v253 = vld [vmem:[%s0 + $0x98] sm:$0xff]
      %v254 = vld [vmem:[%s0 + $0xa0] sm:$0xff]
      %v255 = vld [vmem:[%s0 + $0xa8] sm:$0xff]
      %v256 = vld [vmem:[%s0 + $0xb0] sm:$0xff]
      %v257 = vld [vmem:[%s0 + $0xb8] sm:$0xff]
      %v258 = vld [vmem:[%s0 + $0xc0] sm:$0xff]
      %v259 = vld [vmem:[%s0 + $0xc8] sm:$0xff]
      %v260 = vld [vmem:[%s0 + $0xd0] sm:$0xff]
      %v261 = vld [vmem:[%s0 + $0xd8] sm:$0xff]
      %v262 = vld [vmem:[%s0 + $0xe0] sm:$0xff]
      %v263 = vld [vmem:[%s0 + $0xe8] sm:$0xff]
      %v264 = vld [vmem:[%s0 + $0xf0] sm:$0xff]
      %v265 = vld [vmem:[%s0 + $0xf8] sm:$0xff]
      %v266 = vld [vmem:[%s0 + $0x100] sm:$0xff]
      %v267 = vld [vmem:[%s0 + $0x108] sm:$0xff]
      %v268 = vld [vmem:[%s0 + $0x110] sm:$0xff]
      %v269 = vld [vmem:[%s0 + $0x118] sm:$0xff]
      %v270 = vld [vmem:[%s0 + $0x120] sm:$0xff]
      %v271 = vld [vmem:[%s0 + $0x128] sm:$0xff]
      %v272 = vld [vmem:[%s0 + $0x130] sm:$0xff]
      %v273 = vld [vmem:[%s0 + $0x138] sm:$0xff]
      %vm274 = vcmask 556032
      %v275 = vsel %vm274, %v235, 0.0
      %v276 = vadd.f32 %v234, %v275
      %277 = vadd.xlane.f32.xlu0 %v276
      %v278 = vpop.xlane.xlu0 %277
      %v279 = vsel %vm274, %v237, 0.0
      %v280 = vadd.f32 %v236, %v279
      %281 = vadd.xlane.f32.xlu0 %v280
      %v282 = vpop.xlane.xlu0 %281
      %v283 = vsel %vm274, %v239, 0.0
      %v284 = vadd.f32 %v238, %v283
      %285 = vadd.xlane.f32.xlu0 %v284
      %v286 = vpop.xlane.xlu0 %285
      %v287 = vsel %vm274, %v241, 0.0
      %v288 = vadd.f32 %v240, %v287
      %289 = vadd.xlane.f32.xlu0 %v288
      %v290 = vpop.xlane.xlu0 %289
      %v291 = vsel %vm274, %v243, 0.0
      %v292 = vadd.f32 %v242, %v291
      %293 = vadd.xlane.f32.xlu0 %v292
      %v294 = vpop.xlane.xlu0 %293
      %v295 = vsel %vm274, %v245, 0.0
      %v296 = vadd.f32 %v244, %v295
      %297 = vadd.xlane.f32.xlu0 %v296
      %v298 = vpop.xlane.xlu0 %297
      %v299 = vsel %vm274, %v247, 0.0
      %v300 = vadd.f32 %v246, %v299
      %301 = vadd.xlane.f32.xlu0 %v300
      %v302 = vpop.xlane.xlu0 %301
      %v303 = vsel %vm274, %v249, 0.0
      %v304 = vadd.f32 %v248, %v303
      %305 = vadd.xlane.f32.xlu0 %v304
      %v306 = vpop.xlane.xlu0 %305
      %v307 = vsel %vm274, %v251, 0.0
      %v308 = vadd.f32 %v250, %v307
      %309 = vadd.xlane.f32.xlu0 %v308
      %v310 = vpop.xlane.xlu0 %309
      %v311 = vsel %vm274, %v253, 0.0
      %v312 = vadd.f32 %v252, %v311
      %313 = vadd.xlane.f32.xlu0 %v312
      %v314 = vpop.xlane.xlu0 %313
      %v315 = vsel %vm274, %v255, 0.0
      %v316 = vadd.f32 %v254, %v315
      %317 = vadd.xlane.f32.xlu0 %v316
      %v318 = vpop.xlane.xlu0 %317
      %v319 = vsel %vm274, %v257, 0.0
      %v320 = vadd.f32 %v256, %v319
      %321 = vadd.xlane.f32.xlu0 %v320
      %v322 = vpop.xlane.xlu0 %321
      %v323 = vsel %vm274, %v259, 0.0
      %v324 = vadd.f32 %v258, %v323
      %325 = vadd.xlane.f32.xlu0 %v324
      %v326 = vpop.xlane.xlu0 %325
      %v327 = vsel %vm274, %v261, 0.0
      %v328 = vadd.f32 %v260, %v327
      %329 = vadd.xlane.f32.xlu0 %v328
      %v330 = vpop.xlane.xlu0 %329
      %v331 = vsel %vm274, %v263, 0.0
      %v332 = vadd.f32 %v262, %v331
      %333 = vadd.xlane.f32.xlu0 %v332
      %v334 = vpop.xlane.xlu0 %333
      %v335 = vsel %vm274, %v265, 0.0
      %v336 = vadd.f32 %v264, %v335
      %337 = vadd.xlane.f32.xlu0 %v336
      %v338 = vpop.xlane.xlu0 %337
      %v339 = vsel %vm274, %v267, 0.0
      %v340 = vadd.f32 %v266, %v339
      %341 = vadd.xlane.f32.xlu0 %v340
      %v342 = vpop.xlane.xlu0 %341
      %v343 = vsel %vm274, %v269, 0.0
      %v344 = vadd.f32 %v268, %v343
      %345 = vadd.xlane.f32.xlu0 %v344
      %v346 = vpop.xlane.xlu0 %345
      %v347 = vsel %vm274, %v271, 0.0
      %v348 = vadd.f32 %v270, %v347
      %349 = vadd.xlane.f32.xlu0 %v348
      %v350 = vpop.xlane.xlu0 %349
      %v351 = vsel %vm274, %v273, 0.0
      %v352 = vadd.f32 %v272, %v351
      %353 = vadd.xlane.f32.xlu0 %v352
      %v354 = vpop.xlane.xlu0 %353
      %v355 = vmul.f32 %v278, 0.0051020407
      %v356 = vmul.f32 %v282, 0.0051020407
      %v357 = vmul.f32 %v286, 0.0051020407
      %v358 = vmul.f32 %v290, 0.0051020407
      %v359 = vmul.f32 %v294, 0.0051020407
      %v360 = vmul.f32 %v298, 0.0051020407
      %v361 = vmul.f32 %v302, 0.0051020407
      %v362 = vmul.f32 %v306, 0.0051020407
      %v363 = vmul.f32 %v310, 0.0051020407
      %v364 = vmul.f32 %v314, 0.0051020407
      %v365 = vmul.f32 %v318, 0.0051020407
      %v366 = vmul.f32 %v322, 0.0051020407
      %v367 = vmul.f32 %v326, 0.0051020407
      %v368 = vmul.f32 %v330, 0.0051020407
      %v369 = vmul.f32 %v334, 0.0051020407
      %v370 = vmul.f32 %v338, 0.0051020407
      %v371 = vmul.f32 %v342, 0.0051020407
      %v372 = vmul.f32 %v346, 0.0051020407
      %v373 = vmul.f32 %v350, 0.0051020407
      %v374 = vmul.f32 %v354, 0.0051020407
      %v375 = vsub.f32 %v234, %v355
      %v376 = vsub.f32 %v235, %v355
      %v377 = vsub.f32 %v236, %v356
      %v378 = vsub.f32 %v237, %v356
      %v379 = vsub.f32 %v238, %v357
      %v380 = vsub.f32 %v239, %v357
      %v381 = vsub.f32 %v240, %v358
      %v382 = vsub.f32 %v241, %v358
      %v383 = vsub.f32 %v242, %v359
      %v384 = vsub.f32 %v243, %v359
      %v385 = vsub.f32 %v244, %v360
      %v386 = vsub.f32 %v245, %v360
      %v387 = vsub.f32 %v246, %v361
      %v388 = vsub.f32 %v247, %v361
      %v389 = vsub.f32 %v248, %v362
      %v390 = vsub.f32 %v249, %v362
      %v391 = vsub.f32 %v250, %v363
      %v392 = vsub.f32 %v251, %v363
      %v393 = vsub.f32 %v252, %v364
      %v394 = vsub.f32 %v253, %v364
      %v395 = vsub.f32 %v254, %v365
      %v396 = vsub.f32 %v255, %v365
      %v397 = vsub.f32 %v256, %v366
      %v398 = vsub.f32 %v257, %v366
      %v399 = vsub.f32 %v258, %v367
      %v400 = vsub.f32 %v259, %v367
      %v401 = vsub.f32 %v260, %v368
      %v402 = vsub.f32 %v261, %v368
      %v403 = vsub.f32 %v262, %v369
      %v404 = vsub.f32 %v263, %v369
      %v405 = vsub.f32 %v264, %v370
      %v406 = vsub.f32 %v265, %v370
      %v407 = vsub.f32 %v266, %v371
      %v408 = vsub.f32 %v267, %v371
      %v409 = vsub.f32 %v268, %v372
      %v410 = vsub.f32 %v269, %v372
      %v411 = vsub.f32 %v270, %v373
      %v412 = vsub.f32 %v271, %v373
      %v413 = vsub.f32 %v272, %v374
      %v414 = vsub.f32 %v273, %v374
      %v415 = vmul.f32 %v375, %v375
      %v416 = vmul.f32 %v376, %v376
      %v417 = vmul.f32 %v377, %v377
      %v418 = vmul.f32 %v378, %v378
      %v419 = vmul.f32 %v379, %v379
      %v420 = vmul.f32 %v380, %v380
      %v421 = vmul.f32 %v381, %v381
      %v422 = vmul.f32 %v382, %v382
      %v423 = vmul.f32 %v383, %v383
      %v424 = vmul.f32 %v384, %v384
      %v425 = vmul.f32 %v385, %v385
      %v426 = vmul.f32 %v386, %v386
      %v427 = vmul.f32 %v387, %v387
      %v428 = vmul.f32 %v388, %v388
      %v429 = vmul.f32 %v389, %v389
      %v430 = vmul.f32 %v390, %v390
      %v431 = vmul.f32 %v391, %v391
      %v432 = vmul.f32 %v392, %v392
      %v433 = vmul.f32 %v393, %v393
      %v434 = vmul.f32 %v394, %v394
      %v435 = vmul.f32 %v395, %v395
      %v436 = vmul.f32 %v396, %v396
      %v437 = vmul.f32 %v397, %v397
      %v438 = vmul.f32 %v398, %v398
      %v439 = vmul.f32 %v399, %v399
      %v440 = vmul.f32 %v400, %v400
      %v441 = vmul.f32 %v401, %v401
      %v442 = vmul.f32 %v402, %v402
      %v443 = vmul.f32 %v403, %v403
      %v444 = vmul.f32 %v404, %v404
      %v445 = vmul.f32 %v405, %v405
      %v446 = vmul.f32 %v406, %v406
      %v447 = vmul.f32 %v407, %v407
      %v448 = vmul.f32 %v408, %v408
      %v449 = vmul.f32 %v409, %v409
      %v450 = vmul.f32 %v410, %v410
      %v451 = vmul.f32 %v411, %v411
      %v452 = vmul.f32 %v412, %v412
      %v453 = vmul.f32 %v413, %v413
      %v454 = vmul.f32 %v414, %v414
      %v455 = vsel %vm274, %v416, 0.0
      %v456 = vadd.f32 %v415, %v455
      %457 = vadd.xlane.f32.xlu0 %v456
      %v458 = vpop.xlane.xlu0 %457
      %v459 = vsel %vm274, %v418, 0.0
      %v460 = vadd.f32 %v417, %v459
      %461 = vadd.xlane.f32.xlu0 %v460
      %v462 = vpop.xlane.xlu0 %461
      %v463 = vsel %vm274, %v420, 0.0
      %v464 = vadd.f32 %v419, %v463
      %465 = vadd.xlane.f32.xlu0 %v464
      %v466 = vpop.xlane.xlu0 %465
      %v467 = vsel %vm274, %v422, 0.0
      %v468 = vadd.f32 %v421, %v467
      %469 = vadd.xlane.f32.xlu0 %v468
      %v470 = vpop.xlane.xlu0 %469
      %v471 = vsel %vm274, %v424, 0.0
      %v472 = vadd.f32 %v423, %v471
      %473 = vadd.xlane.f32.xlu0 %v472
      %v474 = vpop.xlane.xlu0 %473
      %v475 = vsel %vm274, %v426, 0.0
      %v476 = vadd.f32 %v425, %v475
      %477 = vadd.xlane.f32.xlu0 %v476
      %v478 = vpop.xlane.xlu0 %477
      %v479 = vsel %vm274, %v428, 0.0
      %v480 = vadd.f32 %v427, %v479
      %481 = vadd.xlane.f32.xlu0 %v480
      %v482 = vpop.xlane.xlu0 %481
      %v483 = vsel %vm274, %v430, 0.0
      %v484 = vadd.f32 %v429, %v483
      %485 = vadd.xlane.f32.xlu0 %v484
      %v486 = vpop.xlane.xlu0 %485
      %v487 = vsel %vm274, %v432, 0.0
      %v488 = vadd.f32 %v431, %v487
      %489 = vadd.xlane.f32.xlu0 %v488
      %v490 = vpop.xlane.xlu0 %489
      %v491 = vsel %vm274, %v434, 0.0
      %v492 = vadd.f32 %v433, %v491
      %493 = vadd.xlane.f32.xlu0 %v492
      %v494 = vpop.xlane.xlu0 %493
      %v495 = vsel %vm274, %v436, 0.0
      %v496 = vadd.f32 %v435, %v495
      %497 = vadd.xlane.f32.xlu0 %v496
      %v498 = vpop.xlane.xlu0 %497
      %v499 = vsel %vm274, %v438, 0.0
      %v500 = vadd.f32 %v437, %v499
      %501 = vadd.xlane.f32.xlu0 %v500
      %v502 = vpop.xlane.xlu0 %501
      %v503 = vsel %vm274, %v440, 0.0
      %v504 = vadd.f32 %v439, %v503
      %505 = vadd.xlane.f32.xlu0 %v504
      %v506 = vpop.xlane.xlu0 %505
      %v507 = vsel %vm274, %v442, 0.0
      %v508 = vadd.f32 %v441, %v507
      %509 = vadd.xlane.f32.xlu0 %v508
      %v510 = vpop.xlane.xlu0 %509
      %v511 = vsel %vm274, %v444, 0.0
      %v512 = vadd.f32 %v443, %v511
      %513 = vadd.xlane.f32.xlu0 %v512
      %v514 = vpop.xlane.xlu0 %513
      %v515 = vsel %vm274, %v446, 0.0
      %v516 = vadd.f32 %v445, %v515
      %517 = vadd.xlane.f32.xlu0 %v516
      %v518 = vpop.xlane.xlu0 %517
      %v519 = vsel %vm274, %v448, 0.0
      %v520 = vadd.f32 %v447, %v519
      %521 = vadd.xlane.f32.xlu0 %v520
      %v522 = vpop.xlane.xlu0 %521
      %v523 = vsel %vm274, %v450, 0.0
      %v524 = vadd.f32 %v449, %v523
      %525 = vadd.xlane.f32.xlu0 %v524
      %v526 = vpop.xlane.xlu0 %525
      %v527 = vsel %vm274, %v452, 0.0
      %v528 = vadd.f32 %v451, %v527
      %529 = vadd.xlane.f32.xlu0 %v528
      %v530 = vpop.xlane.xlu0 %529
      %v531 = vsel %vm274, %v454, 0.0
      %v532 = vadd.f32 %v453, %v531
      %533 = vadd.xlane.f32.xlu0 %v532
      %v534 = vpop.xlane.xlu0 %533
      %v535 = vmul.f32 %v458, 0.0051020407
      %v536 = vmul.f32 %v462, 0.0051020407
      %v537 = vmul.f32 %v466, 0.0051020407
      %v538 = vmul.f32 %v470, 0.0051020407
      %v539 = vmul.f32 %v474, 0.0051020407
      %v540 = vmul.f32 %v478, 0.0051020407
      %v541 = vmul.f32 %v482, 0.0051020407
      %v542 = vmul.f32 %v486, 0.0051020407
      %v543 = vmul.f32 %v490, 0.0051020407
      %v544 = vmul.f32 %v494, 0.0051020407
      %v545 = vmul.f32 %v498, 0.0051020407
      %v546 = vmul.f32 %v502, 0.0051020407
      %v547 = vmul.f32 %v506, 0.0051020407
      %v548 = vmul.f32 %v510, 0.0051020407
      %v549 = vmul.f32 %v514, 0.0051020407
      %v550 = vmul.f32 %v518, 0.0051020407
      %v551 = vmul.f32 %v522, 0.0051020407
      %v552 = vmul.f32 %v526, 0.0051020407
      %v553 = vmul.f32 %v530, 0.0051020407
      %v554 = vmul.f32 %v534, 0.0051020407
      %v555 = vadd.f32 %v535, 0.001
      %v556 = vadd.f32 %v536, 0.001
      %v557 = vadd.f32 %v537, 0.001
      %v558 = vadd.f32 %v538, 0.001
      %v559 = vadd.f32 %v539, 0.001
      %v560 = vadd.f32 %v540, 0.001
      %v561 = vadd.f32 %v541, 0.001
      %v562 = vadd.f32 %v542, 0.001
      %v563 = vadd.f32 %v543, 0.001
      %v564 = vadd.f32 %v544, 0.001
      %v565 = vadd.f32 %v545, 0.001
      %v566 = vadd.f32 %v546, 0.001
      %v567 = vadd.f32 %v547, 0.001
      %v568 = vadd.f32 %v548, 0.001
      %v569 = vadd.f32 %v549, 0.001
      %v570 = vadd.f32 %v550, 0.001
      %v571 = vadd.f32 %v551, 0.001
      %v572 = vadd.f32 %v552, 0.001
      %v573 = vadd.f32 %v553, 0.001
      %v574 = vadd.f32 %v554, 0.001
      %v575 = vrsqrt.pop %v555
      %v576 = vmul.f32 %v575, %v555
      %v577 = vmul.f32 %v576, %v575
      %v578 = vmul.f32 0.5, %v577
      %v579 = vsub.f32 1.5, %v578
      %v580 = vmul.f32 %v575, %v579
      %vm581 = vweird.f32 %v555
      %vm582 = vweird.f32 %v575
      %vm583 = vmor %vm581, %vm582
      %v584 = vsel %vm583, %v575, %v580
      %v585 = vrsqrt.pop %v556
      %v586 = vmul.f32 %v585, %v556
      %v587 = vmul.f32 %v586, %v585
      %v588 = vmul.f32 0.5, %v587
      %v589 = vsub.f32 1.5, %v588
      %v590 = vmul.f32 %v585, %v589
      %vm591 = vweird.f32 %v556
      %vm592 = vweird.f32 %v585
      %vm593 = vmor %vm591, %vm592
      %v594 = vsel %vm593, %v585, %v590
      %v595 = vrsqrt.pop %v557
      %v596 = vmul.f32 %v595, %v557
      %v597 = vmul.f32 %v596, %v595
      %v598 = vmul.f32 0.5, %v597
      %v599 = vsub.f32 1.5, %v598
      %v600 = vmul.f32 %v595, %v599
      %vm601 = vweird.f32 %v557
      %vm602 = vweird.f32 %v595
      %vm603 = vmor %vm601, %vm602
      %v604 = vsel %vm603, %v595, %v600
      %v605 = vrsqrt.pop %v558
      %v606 = vmul.f32 %v605, %v558
      %v607 = vmul.f32 %v606, %v605
      %v608 = vmul.f32 0.5, %v607
      %v609 = vsub.f32 1.5, %v608
      %v610 = vmul.f32 %v605, %v609
      %vm611 = vweird.f32 %v558
      %vm612 = vweird.f32 %v605
      %vm613 = vmor %vm611, %vm612
      %v614 = vsel %vm613, %v605, %v610
      %v615 = vrsqrt.pop %v559
      %v616 = vmul.f32 %v615, %v559
      %v617 = vmul.f32 %v616, %v615
      %v618 = vmul.f32 0.5, %v617
      %v619 = vsub.f32 1.5, %v618
      %v620 = vmul.f32 %v615, %v619
      %vm621 = vweird.f32 %v559
      %vm622 = vweird.f32 %v615
      %vm623 = vmor %vm621, %vm622
      %v624 = vsel %vm623, %v615, %v620
      %v625 = vrsqrt.pop %v560
      %v626 = vmul.f32 %v625, %v560
      %v627 = vmul.f32 %v626, %v625
      %v628 = vmul.f32 0.5, %v627
      %v629 = vsub.f32 1.5, %v628
      %v630 = vmul.f32 %v625, %v629
      %vm631 = vweird.f32 %v560
      %vm632 = vweird.f32 %v625
      %vm633 = vmor %vm631, %vm632
      %v634 = vsel %vm633, %v625, %v630
      %v635 = vrsqrt.pop %v561
      %v636 = vmul.f32 %v635, %v561
      %v637 = vmul.f32 %v636, %v635
      %v638 = vmul.f32 0.5, %v637
      %v639 = vsub.f32 1.5, %v638
      %v640 = vmul.f32 %v635, %v639
      %vm641 = vweird.f32 %v561
      %vm642 = vweird.f32 %v635
      %vm643 = vmor %vm641, %vm642
      %v644 = vsel %vm643, %v635, %v640
      %v645 = vrsqrt.pop %v562
      %v646 = vmul.f32 %v645, %v562
      %v647 = vmul.f32 %v646, %v645
      %v648 = vmul.f32 0.5, %v647
      %v649 = vsub.f32 1.5, %v648
      %v650 = vmul.f32 %v645, %v649
      %vm651 = vweird.f32 %v562
      %vm652 = vweird.f32 %v645
      %vm653 = vmor %vm651, %vm652
      %v654 = vsel %vm653, %v645, %v650
      %v655 = vrsqrt.pop %v563
      %v656 = vmul.f32 %v655, %v563
      %v657 = vmul.f32 %v656, %v655
      %v658 = vmul.f32 0.5, %v657
      %v659 = vsub.f32 1.5, %v658
      %v660 = vmul.f32 %v655, %v659
      %vm661 = vweird.f32 %v563
      %vm662 = vweird.f32 %v655
      %vm663 = vmor %vm661, %vm662
      %v664 = vsel %vm663, %v655, %v660
      %v665 = vrsqrt.pop %v564
      %v666 = vmul.f32 %v665, %v564
      %v667 = vmul.f32 %v666, %v665
      %v668 = vmul.f32 0.5, %v667
      %v669 = vsub.f32 1.5, %v668
      %v670 = vmul.f32 %v665, %v669
      %vm671 = vweird.f32 %v564
      %vm672 = vweird.f32 %v665
      %vm673 = vmor %vm671, %vm672
      %v674 = vsel %vm673, %v665, %v670
      %v675 = vrsqrt.pop %v565
      %v676 = vmul.f32 %v675, %v565
      %v677 = vmul.f32 %v676, %v675
      %v678 = vmul.f32 0.5, %v677
      %v679 = vsub.f32 1.5, %v678
      %v680 = vmul.f32 %v675, %v679
      %vm681 = vweird.f32 %v565
      %vm682 = vweird.f32 %v675
      %vm683 = vmor %vm681, %vm682
      %v684 = vsel %vm683, %v675, %v680
      %v685 = vrsqrt.pop %v566
      %v686 = vmul.f32 %v685, %v566
      %v687 = vmul.f32 %v686, %v685
      %v688 = vmul.f32 0.5, %v687
      %v689 = vsub.f32 1.5, %v688
      %v690 = vmul.f32 %v685, %v689
      %vm691 = vweird.f32 %v566
      %vm692 = vweird.f32 %v685
      %vm693 = vmor %vm691, %vm692
      %v694 = vsel %vm693, %v685, %v690
      %v695 = vrsqrt.pop %v567
      %v696 = vmul.f32 %v695, %v567
      %v697 = vmul.f32 %v696, %v695
      %v698 = vmul.f32 0.5, %v697
      %v699 = vsub.f32 1.5, %v698
      %v700 = vmul.f32 %v695, %v699
      %vm701 = vweird.f32 %v567
      %vm702 = vweird.f32 %v695
      %vm703 = vmor %vm701, %vm702
      %v704 = vsel %vm703, %v695, %v700
      %v705 = vrsqrt.pop %v568
      %v706 = vmul.f32 %v705, %v568
      %v707 = vmul.f32 %v706, %v705
      %v708 = vmul.f32 0.5, %v707
      %v709 = vsub.f32 1.5, %v708
      %v710 = vmul.f32 %v705, %v709
      %vm711 = vweird.f32 %v568
      %vm712 = vweird.f32 %v705
      %vm713 = vmor %vm711, %vm712
      %v714 = vsel %vm713, %v705, %v710
      %v715 = vrsqrt.pop %v569
      %v716 = vmul.f32 %v715, %v569
      %v717 = vmul.f32 %v716, %v715
      %v718 = vmul.f32 0.5, %v717
      %v719 = vsub.f32 1.5, %v718
      %v720 = vmul.f32 %v715, %v719
      %vm721 = vweird.f32 %v569
      %vm722 = vweird.f32 %v715
      %vm723 = vmor %vm721, %vm722
      %v724 = vsel %vm723, %v715, %v720
      %v725 = vrsqrt.pop %v570
      %v726 = vmul.f32 %v725, %v570
      %v727 = vmul.f32 %v726, %v725
      %v728 = vmul.f32 0.5, %v727
      %v729 = vsub.f32 1.5, %v728
      %v730 = vmul.f32 %v725, %v729
      %vm731 = vweird.f32 %v570
      %vm732 = vweird.f32 %v725
      %vm733 = vmor %vm731, %vm732
      %v734 = vsel %vm733, %v725, %v730
      %v735 = vrsqrt.pop %v571
      %v736 = vmul.f32 %v735, %v571
      %v737 = vmul.f32 %v736, %v735
      %v738 = vmul.f32 0.5, %v737
      %v739 = vsub.f32 1.5, %v738
      %v740 = vmul.f32 %v735, %v739
      %vm741 = vweird.f32 %v571
      %vm742 = vweird.f32 %v735
      %vm743 = vmor %vm741, %vm742
      %v744 = vsel %vm743, %v735, %v740
      %v745 = vrsqrt.pop %v572
      %v746 = vmul.f32 %v745, %v572
      %v747 = vmul.f32 %v746, %v745
      %v748 = vmul.f32 0.5, %v747
      %v749 = vsub.f32 1.5, %v748
      %v750 = vmul.f32 %v745, %v749
      %vm751 = vweird.f32 %v572
      %vm752 = vweird.f32 %v745
      %vm753 = vmor %vm751, %vm752
      %v754 = vsel %vm753, %v745, %v750
      %v755 = vrsqrt.pop %v573
      %v756 = vmul.f32 %v755, %v573
      %v757 = vmul.f32 %v756, %v755
      %v758 = vmul.f32 0.5, %v757
      %v759 = vsub.f32 1.5, %v758
      %v760 = vmul.f32 %v755, %v759
      %vm761 = vweird.f32 %v573
      %vm762 = vweird.f32 %v755
      %vm763 = vmor %vm761, %vm762
      %v764 = vsel %vm763, %v755, %v760
      %v765 = vrsqrt.pop %v574
      %v766 = vmul.f32 %v765, %v574
      %v767 = vmul.f32 %v766, %v765
      %v768 = vmul.f32 0.5, %v767
      %v769 = vsub.f32 1.5, %v768
      %v770 = vmul.f32 %v765, %v769
      %vm771 = vweird.f32 %v574
      %vm772 = vweird.f32 %v765
      %vm773 = vmor %vm771, %vm772
      %v774 = vsel %vm773, %v765, %v770
      %v775 = vld [vmem:[%s2] sm:$0xff]
      %v776 = vld [vmem:[%s2 + $0x8] sm:$0xff]
      %v777 = vld [vmem:[%s2 + $0x10] sm:$0xff]
      %v778 = vld [vmem:[%s2 + $0x18] sm:$0xff]
      %v779 = vld [vmem:[%s2 + $0x20] sm:$0xff]
      %v780 = vld [vmem:[%s2 + $0x28] sm:$0xff]
      %v781 = vld [vmem:[%s2 + $0x30] sm:$0xff]
      %v782 = vld [vmem:[%s2 + $0x38] sm:$0xff]
      %v783 = vld [vmem:[%s2 + $0x40] sm:$0xff]
      %v784 = vld [vmem:[%s2 + $0x48] sm:$0xff]
      %v785 = vld [vmem:[%s2 + $0x50] sm:$0xff]
      %v786 = vld [vmem:[%s2 + $0x58] sm:$0xff]
      %v787 = vld [vmem:[%s2 + $0x60] sm:$0xff]
      %v788 = vld [vmem:[%s2 + $0x68] sm:$0xff]
      %v789 = vld [vmem:[%s2 + $0x70] sm:$0xff]
      %v790 = vld [vmem:[%s2 + $0x78] sm:$0xff]
      %v791 = vld [vmem:[%s2 + $0x80] sm:$0xff]
      %v792 = vld [vmem:[%s2 + $0x88] sm:$0xff]
      %v793 = vld [vmem:[%s2 + $0x90] sm:$0xff]
      %v794 = vld [vmem:[%s2 + $0x98] sm:$0xff]
      %v795 = vmul.f32 %v775, %v584
      %v796 = vmul.f32 %v776, %v594
      %v797 = vmul.f32 %v777, %v604
      %v798 = vmul.f32 %v778, %v614
      %v799 = vmul.f32 %v779, %v624
      %v800 = vmul.f32 %v780, %v634
      %v801 = vmul.f32 %v781, %v644
      %v802 = vmul.f32 %v782, %v654
      %v803 = vmul.f32 %v783, %v664
      %v804 = vmul.f32 %v784, %v674
      %v805 = vmul.f32 %v785, %v684
      %v806 = vmul.f32 %v786, %v694
      %v807 = vmul.f32 %v787, %v704
      %v808 = vmul.f32 %v788, %v714
      %v809 = vmul.f32 %v789, %v724
      %v810 = vmul.f32 %v790, %v734
      %v811 = vmul.f32 %v791, %v744
      %v812 = vmul.f32 %v792, %v754
      %v813 = vmul.f32 %v793, %v764
      %v814 = vmul.f32 %v794, %v774
      %816 = vset.pattern.permute.xlu0 0
      %817 = vperm.xlu0 %816, %v795
      %v818 = vpop.permute.xlu0 %817
      %821 = vset.pattern.permute.xlu0 0
      %822 = vperm.xlu0 %821, %v796
      %v823 = vpop.permute.xlu0 %822
      %826 = vset.pattern.permute.xlu0 0
      %827 = vperm.xlu0 %826, %v797
      %v828 = vpop.permute.xlu0 %827
      %831 = vset.pattern.permute.xlu0 0
      %832 = vperm.xlu0 %831, %v798
      %v833 = vpop.permute.xlu0 %832
      %836 = vset.pattern.permute.xlu0 0
      %837 = vperm.xlu0 %836, %v799
      %v838 = vpop.permute.xlu0 %837
      %841 = vset.pattern.permute.xlu0 0
      %842 = vperm.xlu0 %841, %v800
      %v843 = vpop.permute.xlu0 %842
      %846 = vset.pattern.permute.xlu0 0
      %847 = vperm.xlu0 %846, %v801
      %v848 = vpop.permute.xlu0 %847
      %851 = vset.pattern.permute.xlu0 0
      %852 = vperm.xlu0 %851, %v802
      %v853 = vpop.permute.xlu0 %852
      %856 = vset.pattern.permute.xlu0 0
      %857 = vperm.xlu0 %856, %v803
      %v858 = vpop.permute.xlu0 %857
      %861 = vset.pattern.permute.xlu0 0
      %862 = vperm.xlu0 %861, %v804
      %v863 = vpop.permute.xlu0 %862
      %866 = vset.pattern.permute.xlu0 0
      %867 = vperm.xlu0 %866, %v805
      %v868 = vpop.permute.xlu0 %867
      %871 = vset.pattern.permute.xlu0 0
      %872 = vperm.xlu0 %871, %v806
      %v873 = vpop.permute.xlu0 %872
      %876 = vset.pattern.permute.xlu0 0
      %877 = vperm.xlu0 %876, %v807
      %v878 = vpop.permute.xlu0 %877
      %881 = vset.pattern.permute.xlu0 0
      %882 = vperm.xlu0 %881, %v808
      %v883 = vpop.permute.xlu0 %882
      %886 = vset.pattern.permute.xlu0 0
      %887 = vperm.xlu0 %886, %v809
      %v888 = vpop.permute.xlu0 %887
      %891 = vset.pattern.permute.xlu0 0
      %892 = vperm.xlu0 %891, %v810
      %v893 = vpop.permute.xlu0 %892
      %896 = vset.pattern.permute.xlu0 0
      %897 = vperm.xlu0 %896, %v811
      %v898 = vpop.permute.xlu0 %897
      %901 = vset.pattern.permute.xlu0 0
      %902 = vperm.xlu0 %901, %v812
      %v903 = vpop.permute.xlu0 %902
      %906 = vset.pattern.permute.xlu0 0
      %907 = vperm.xlu0 %906, %v813
      %v908 = vpop.permute.xlu0 %907
      %911 = vset.pattern.permute.xlu0 0
      %912 = vperm.xlu0 %911, %v814
      %v913 = vpop.permute.xlu0 %912
      %v915 = vmul.f32 %v375, %v818
      %v916 = vmul.f32 %v376, %v818
      %v917 = vmul.f32 %v377, %v823
      %v918 = vmul.f32 %v378, %v823
      %v919 = vmul.f32 %v379, %v828
      %v920 = vmul.f32 %v380, %v828
      %v921 = vmul.f32 %v381, %v833
      %v922 = vmul.f32 %v382, %v833
      %v923 = vmul.f32 %v383, %v838
      %v924 = vmul.f32 %v384, %v838
      %v925 = vmul.f32 %v385, %v843
      %v926 = vmul.f32 %v386, %v843
      %v927 = vmul.f32 %v387, %v848
      %v928 = vmul.f32 %v388, %v848
      %v929 = vmul.f32 %v389, %v853
      %v930 = vmul.f32 %v390, %v853
      %v931 = vmul.f32 %v391, %v858
      %v932 = vmul.f32 %v392, %v858
      %v933 = vmul.f32 %v393, %v863
      %v934 = vmul.f32 %v394, %v863
      %v935 = vmul.f32 %v395, %v868
      %v936 = vmul.f32 %v396, %v868
      %v937 = vmul.f32 %v397, %v873
      %v938 = vmul.f32 %v398, %v873
      %v939 = vmul.f32 %v399, %v878
      %v940 = vmul.f32 %v400, %v878
      %v941 = vmul.f32 %v401, %v883
      %v942 = vmul.f32 %v402, %v883
      %v943 = vmul.f32 %v403, %v888
      %v944 = vmul.f32 %v404, %v888
      %v945 = vmul.f32 %v405, %v893
      %v946 = vmul.f32 %v406, %v893
      %v947 = vmul.f32 %v407, %v898
      %v948 = vmul.f32 %v408, %v898
      %v949 = vmul.f32 %v409, %v903
      %v950 = vmul.f32 %v410, %v903
      %v951 = vmul.f32 %v411, %v908
      %v952 = vmul.f32 %v412, %v908
      %v953 = vmul.f32 %v413, %v913
      %v954 = vmul.f32 %v414, %v913
      %v955 = vld [vmem:[%s3] sm:$0xff]
      %v956 = vld [vmem:[%s3 + $0x8] sm:$0xff]
      %v957 = vld [vmem:[%s3 + $0x10] sm:$0xff]
      %v958 = vld [vmem:[%s3 + $0x18] sm:$0xff]
      %v959 = vld [vmem:[%s3 + $0x20] sm:$0xff]
      %v960 = vld [vmem:[%s3 + $0x28] sm:$0xff]
      %v961 = vld [vmem:[%s3 + $0x30] sm:$0xff]
      %v962 = vld [vmem:[%s3 + $0x38] sm:$0xff]
      %v963 = vld [vmem:[%s3 + $0x40] sm:$0xff]
      %v964 = vld [vmem:[%s3 + $0x48] sm:$0xff]
      %v965 = vld [vmem:[%s3 + $0x50] sm:$0xff]
      %v966 = vld [vmem:[%s3 + $0x58] sm:$0xff]
      %v967 = vld [vmem:[%s3 + $0x60] sm:$0xff]
      %v968 = vld [vmem:[%s3 + $0x68] sm:$0xff]
      %v969 = vld [vmem:[%s3 + $0x70] sm:$0xff]
      %v970 = vld [vmem:[%s3 + $0x78] sm:$0xff]
      %v971 = vld [vmem:[%s3 + $0x80] sm:$0xff]
      %v972 = vld [vmem:[%s3 + $0x88] sm:$0xff]
      %v973 = vld [vmem:[%s3 + $0x90] sm:$0xff]
      %v974 = vld [vmem:[%s3 + $0x98] sm:$0xff]
      %976 = vset.pattern.permute.xlu0 0
      %977 = vperm.xlu0 %976, %v955
      %v978 = vpop.permute.xlu0 %977
      %981 = vset.pattern.permute.xlu0 0
      %982 = vperm.xlu0 %981, %v956
      %v983 = vpop.permute.xlu0 %982
      %986 = vset.pattern.permute.xlu0 0
      %987 = vperm.xlu0 %986, %v957
      %v988 = vpop.permute.xlu0 %987
      %991 = vset.pattern.permute.xlu0 0
      %992 = vperm.xlu0 %991, %v958
      %v993 = vpop.permute.xlu0 %992
      %996 = vset.pattern.permute.xlu0 0
      %997 = vperm.xlu0 %996, %v959
      %v998 = vpop.permute.xlu0 %997
      %1001 = vset.pattern.permute.xlu0 0
      %1002 = vperm.xlu0 %1001, %v960
      %v1003 = vpop.permute.xlu0 %1002
      %1006 = vset.pattern.permute.xlu0 0
      %1007 = vperm.xlu0 %1006, %v961
      %v1008 = vpop.permute.xlu0 %1007
      %1011 = vset.pattern.permute.xlu0 0
      %1012 = vperm.xlu0 %1011, %v962
      %v1013 = vpop.permute.xlu0 %1012
      %1016 = vset.pattern.permute.xlu0 0
      %1017 = vperm.xlu0 %1016, %v963
      %v1018 = vpop.permute.xlu0 %1017
      %1021 = vset.pattern.permute.xlu0 0
      %1022 = vperm.xlu0 %1021, %v964
      %v1023 = vpop.permute.xlu0 %1022
      %1026 = vset.pattern.permute.xlu0 0
      %1027 = vperm.xlu0 %1026, %v965
      %v1028 = vpop.permute.xlu0 %1027
      %1031 = vset.pattern.permute.xlu0 0
      %1032 = vperm.xlu0 %1031, %v966
      %v1033 = vpop.permute.xlu0 %1032
      %1036 = vset.pattern.permute.xlu0 0
      %1037 = vperm.xlu0 %1036, %v967
      %v1038 = vpop.permute.xlu0 %1037
      %1041 = vset.pattern.permute.xlu0 0
      %1042 = vperm.xlu0 %1041, %v968
      %v1043 = vpop.permute.xlu0 %1042
      %1046 = vset.pattern.permute.xlu0 0
      %1047 = vperm.xlu0 %1046, %v969
      %v1048 = vpop.permute.xlu0 %1047
      %1051 = vset.pattern.permute.xlu0 0
      %1052 = vperm.xlu0 %1051, %v970
      %v1053 = vpop.permute.xlu0 %1052
      %1056 = vset.pattern.permute.xlu0 0
      %1057 = vperm.xlu0 %1056, %v971
      %v1058 = vpop.permute.xlu0 %1057
      %1061 = vset.pattern.permute.xlu0 0
      %1062 = vperm.xlu0 %1061, %v972
      %v1063 = vpop.permute.xlu0 %1062
      %1066 = vset.pattern.permute.xlu0 0
      %1067 = vperm.xlu0 %1066, %v973
      %v1068 = vpop.permute.xlu0 %1067
      %1071 = vset.pattern.permute.xlu0 0
      %1072 = vperm.xlu0 %1071, %v974
      %v1073 = vpop.permute.xlu0 %1072
      %v1075 = vadd.f32 %v915, %v978
      %v1076 = vadd.f32 %v916, %v978
      %v1077 = vadd.f32 %v917, %v983
      %v1078 = vadd.f32 %v918, %v983
      %v1079 = vadd.f32 %v919, %v988
      %v1080 = vadd.f32 %v920, %v988
      %v1081 = vadd.f32 %v921, %v993
      %v1082 = vadd.f32 %v922, %v993
      %v1083 = vadd.f32 %v923, %v998
      %v1084 = vadd.f32 %v924, %v998
      %v1085 = vadd.f32 %v925, %v1003
      %v1086 = vadd.f32 %v926, %v1003
      %v1087 = vadd.f32 %v927, %v1008
      %v1088 = vadd.f32 %v928, %v1008
      %v1089 = vadd.f32 %v929, %v1013
      %v1090 = vadd.f32 %v930, %v1013
      %v1091 = vadd.f32 %v931, %v1018
      %v1092 = vadd.f32 %v932, %v1018
      %v1093 = vadd.f32 %v933, %v1023
      %v1094 = vadd.f32 %v934, %v1023
      %v1095 = vadd.f32 %v935, %v1028
      %v1096 = vadd.f32 %v936, %v1028
      %v1097 = vadd.f32 %v937, %v1033
      %v1098 = vadd.f32 %v938, %v1033
      %v1099 = vadd.f32 %v939, %v1038
      %v1100 = vadd.f32 %v940, %v1038
      %v1101 = vadd.f32 %v941, %v1043
      %v1102 = vadd.f32 %v942, %v1043
      %v1103 = vadd.f32 %v943, %v1048
      %v1104 = vadd.f32 %v944, %v1048
      %v1105 = vadd.f32 %v945, %v1053
      %v1106 = vadd.f32 %v946, %v1053
      %v1107 = vadd.f32 %v947, %v1058
      %v1108 = vadd.f32 %v948, %v1058
      %v1109 = vadd.f32 %v949, %v1063
      %v1110 = vadd.f32 %v950, %v1063
      %v1111 = vadd.f32 %v951, %v1068
      %v1112 = vadd.f32 %v952, %v1068
      %v1113 = vadd.f32 %v953, %v1073
      %v1114 = vadd.f32 %v954, %v1073
      %v1115 = vld [vmem:[%s1] sm:$0xff]
      %v1116 = vld [vmem:[%s1 + $0x8] sm:$0xff]
      %v1117 = vld [vmem:[%s1 + $0x10] sm:$0xff]
      %v1118 = vld [vmem:[%s1 + $0x18] sm:$0xff]
      %v1119 = vld [vmem:[%s1 + $0x20] sm:$0xff]
      %v1120 = vld [vmem:[%s1 + $0x28] sm:$0xff]
      %v1121 = vld [vmem:[%s1 + $0x30] sm:$0xff]
      %v1122 = vld [vmem:[%s1 + $0x38] sm:$0xff]
      %v1123 = vld [vmem:[%s1 + $0x40] sm:$0xff]
      %v1124 = vld [vmem:[%s1 + $0x48] sm:$0xff]
      %v1125 = vld [vmem:[%s1 + $0x50] sm:$0xff]
      %v1126 = vld [vmem:[%s1 + $0x58] sm:$0xff]
      %v1127 = vld [vmem:[%s1 + $0x60] sm:$0xff]
      %v1128 = vld [vmem:[%s1 + $0x68] sm:$0xff]
      %v1129 = vld [vmem:[%s1 + $0x70] sm:$0xff]
      %v1130 = vld [vmem:[%s1 + $0x78] sm:$0xff]
      %v1131 = vld [vmem:[%s1 + $0x80] sm:$0xff]
      %v1132 = vld [vmem:[%s1 + $0x88] sm:$0xff]
      %v1133 = vld [vmem:[%s1 + $0x90] sm:$0xff]
      %v1134 = vld [vmem:[%s1 + $0x98] sm:$0xff]
      %v1135 = vld [vmem:[%s1 + $0xa0] sm:$0xff]
      %v1136 = vld [vmem:[%s1 + $0xa8] sm:$0xff]
      %v1137 = vld [vmem:[%s1 + $0xb0] sm:$0xff]
      %v1138 = vld [vmem:[%s1 + $0xb8] sm:$0xff]
      %v1139 = vld [vmem:[%s1 + $0xc0] sm:$0xff]
      %v1140 = vld [vmem:[%s1 + $0xc8] sm:$0xff]
      %v1141 = vld [vmem:[%s1 + $0xd0] sm:$0xff]
      %v1142 = vld [vmem:[%s1 + $0xd8] sm:$0xff]
      %v1143 = vld [vmem:[%s1 + $0xe0] sm:$0xff]
      %v1144 = vld [vmem:[%s1 + $0xe8] sm:$0xff]
      %v1145 = vld [vmem:[%s1 + $0xf0] sm:$0xff]
      %v1146 = vld [vmem:[%s1 + $0xf8] sm:$0xff]
      %v1147 = vld [vmem:[%s1 + $0x100] sm:$0xff]
      %v1148 = vld [vmem:[%s1 + $0x108] sm:$0xff]
      %v1149 = vld [vmem:[%s1 + $0x110] sm:$0xff]
      %v1150 = vld [vmem:[%s1 + $0x118] sm:$0xff]
      %v1151 = vld [vmem:[%s1 + $0x120] sm:$0xff]
      %v1152 = vld [vmem:[%s1 + $0x128] sm:$0xff]
      %v1153 = vld [vmem:[%s1 + $0x130] sm:$0xff]
      %v1154 = vld [vmem:[%s1 + $0x138] sm:$0xff]
      %v1155 = vadd.f32 %v1075, %v1115
      %v1156 = vadd.f32 %v1076, %v1116
      %v1157 = vadd.f32 %v1077, %v1117
      %v1158 = vadd.f32 %v1078, %v1118
      %v1159 = vadd.f32 %v1079, %v1119
      %v1160 = vadd.f32 %v1080, %v1120
      %v1161 = vadd.f32 %v1081, %v1121
      %v1162 = vadd.f32 %v1082, %v1122
      %v1163 = vadd.f32 %v1083, %v1123
      %v1164 = vadd.f32 %v1084, %v1124
      %v1165 = vadd.f32 %v1085, %v1125
      %v1166 = vadd.f32 %v1086, %v1126
      %v1167 = vadd.f32 %v1087, %v1127
      %v1168 = vadd.f32 %v1088, %v1128
      %v1169 = vadd.f32 %v1089, %v1129
      %v1170 = vadd.f32 %v1090, %v1130
      %v1171 = vadd.f32 %v1091, %v1131
      %v1172 = vadd.f32 %v1092, %v1132
      %v1173 = vadd.f32 %v1093, %v1133
      %v1174 = vadd.f32 %v1094, %v1134
      %v1175 = vadd.f32 %v1095, %v1135
      %v1176 = vadd.f32 %v1096, %v1136
      %v1177 = vadd.f32 %v1097, %v1137
      %v1178 = vadd.f32 %v1098, %v1138
      %v1179 = vadd.f32 %v1099, %v1139
      %v1180 = vadd.f32 %v1100, %v1140
      %v1181 = vadd.f32 %v1101, %v1141
      %v1182 = vadd.f32 %v1102, %v1142
      %v1183 = vadd.f32 %v1103, %v1143
      %v1184 = vadd.f32 %v1104, %v1144
      %v1185 = vadd.f32 %v1105, %v1145
      %v1186 = vadd.f32 %v1106, %v1146
      %v1187 = vadd.f32 %v1107, %v1147
      %v1188 = vadd.f32 %v1108, %v1148
      %v1189 = vadd.f32 %v1109, %v1149
      %v1190 = vadd.f32 %v1110, %v1150
      %v1191 = vadd.f32 %v1111, %v1151
      %v1192 = vadd.f32 %v1112, %v1152
      %v1193 = vadd.f32 %v1113, %v1153
      %v1194 = vadd.f32 %v1114, %v1154
      %v1195 = vld [vmem:[%s224] sm:$0xff]
      %v1196 = vld [vmem:[%s224 + $0x8] sm:$0xff]
      %v1197 = vld [vmem:[%s224 + $0x10] sm:$0xff]
      %v1198 = vld [vmem:[%s224 + $0x18] sm:$0xff]
      %v1199 = vld [vmem:[%s224 + $0x20] sm:$0xff]
      %v1200 = vld [vmem:[%s224 + $0x28] sm:$0xff]
      %v1201 = vld [vmem:[%s224 + $0x30] sm:$0xff]
      %v1202 = vld [vmem:[%s224 + $0x38] sm:$0xff]
      %v1203 = vld [vmem:[%s224 + $0x40] sm:$0xff]
      %v1204 = vld [vmem:[%s224 + $0x48] sm:$0xff]
      %v1205 = vld [vmem:[%s224 + $0x50] sm:$0xff]
      %v1206 = vld [vmem:[%s224 + $0x58] sm:$0xff]
      %v1207 = vld [vmem:[%s224 + $0x60] sm:$0xff]
      %v1208 = vld [vmem:[%s224 + $0x68] sm:$0xff]
      %v1209 = vld [vmem:[%s224 + $0x70] sm:$0xff]
      %v1210 = vld [vmem:[%s224 + $0x78] sm:$0xff]
      %v1211 = vld [vmem:[%s224 + $0x80] sm:$0xff]
      %v1212 = vld [vmem:[%s224 + $0x88] sm:$0xff]
      %v1213 = vld [vmem:[%s224 + $0x90] sm:$0xff]
      %v1214 = vld [vmem:[%s224 + $0x98] sm:$0xff]
      %v1215 = vld [vmem:[%s224 + $0xa0] sm:$0xff]
      %v1216 = vld [vmem:[%s224 + $0xa8] sm:$0xff]
      %v1217 = vld [vmem:[%s224 + $0xb0] sm:$0xff]
      %v1218 = vld [vmem:[%s224 + $0xb8] sm:$0xff]
      %v1219 = vld [vmem:[%s224 + $0xc0] sm:$0xff]
      %v1220 = vld [vmem:[%s224 + $0xc8] sm:$0xff]
      %v1221 = vld [vmem:[%s224 + $0xd0] sm:$0xff]
      %v1222 = vld [vmem:[%s224 + $0xd8] sm:$0xff]
      %v1223 = vld [vmem:[%s224 + $0xe0] sm:$0xff]
      %v1224 = vld [vmem:[%s224 + $0xe8] sm:$0xff]
      %v1225 = vld [vmem:[%s224 + $0xf0] sm:$0xff]
      %v1226 = vld [vmem:[%s224 + $0xf8] sm:$0xff]
      %v1227 = vld [vmem:[%s224 + $0x100] sm:$0xff]
      %v1228 = vld [vmem:[%s224 + $0x108] sm:$0xff]
      %v1229 = vld [vmem:[%s224 + $0x110] sm:$0xff]
      %v1230 = vld [vmem:[%s224 + $0x118] sm:$0xff]
      %v1231 = vld [vmem:[%s224 + $0x120] sm:$0xff]
      %v1232 = vld [vmem:[%s224 + $0x128] sm:$0xff]
      %v1233 = vld [vmem:[%s224 + $0x130] sm:$0xff]
      %v1234 = vld [vmem:[%s224 + $0x138] sm:$0xff]
      %v1235 = vld [vmem:[%s224 + $0x140] sm:$0xff]
      %v1236 = vld [vmem:[%s224 + $0x148] sm:$0xff]
      %v1237 = vld [vmem:[%s224 + $0x150] sm:$0xff]
      %v1238 = vld [vmem:[%s224 + $0x158] sm:$0xff]
      %v1239 = vld [vmem:[%s224 + $0x160] sm:$0xff]
      %v1240 = vld [vmem:[%s224 + $0x168] sm:$0xff]
      %v1241 = vld [vmem:[%s224 + $0x170] sm:$0xff]
      %v1242 = vld [vmem:[%s224 + $0x178] sm:$0xff]
      %v1243 = vld [vmem:[%s224 + $0x180] sm:$0xff]
      %v1244 = vld [vmem:[%s224 + $0x188] sm:$0xff]
      %v1245 = vld [vmem:[%s224 + $0x190] sm:$0xff]
      %v1246 = vld [vmem:[%s224 + $0x198] sm:$0xff]
      %v1247 = vld [vmem:[%s224 + $0x1a0] sm:$0xff]
      %v1248 = vld [vmem:[%s224 + $0x1a8] sm:$0xff]
      %v1249 = vld [vmem:[%s224 + $0x1b0] sm:$0xff]
      %v1250 = vld [vmem:[%s224 + $0x1b8] sm:$0xff]
      %v1251 = vld [vmem:[%s224 + $0x1c0] sm:$0xff]
      %v1252 = vld [vmem:[%s224 + $0x1c8] sm:$0xff]
      %v1253 = vld [vmem:[%s224 + $0x1d0] sm:$0xff]
      %v1254 = vld [vmem:[%s224 + $0x1d8] sm:$0xff]
      %v1255 = vpack.c.bf16 %v1157, %v1155
      %v1256 = vpack.c.bf16 %v1158, %v1156
      %v1257 = vpack.c.bf16 %v1161, %v1159
      %v1258 = vpack.c.bf16 %v1162, %v1160
      %v1259 = vpack.c.bf16 %v1165, %v1163
      %v1260 = vpack.c.bf16 %v1166, %v1164
      %v1261 = vpack.c.bf16 %v1169, %v1167
      %v1262 = vpack.c.bf16 %v1170, %v1168
      %v1263 = vpack.c.bf16 %v1173, %v1171
      %v1264 = vpack.c.bf16 %v1174, %v1172
      %v1265 = vpack.c.bf16 %v1177, %v1175
      %v1266 = vpack.c.bf16 %v1178, %v1176
      %v1267 = vpack.c.bf16 %v1181, %v1179
      %v1268 = vpack.c.bf16 %v1182, %v1180
      %v1269 = vpack.c.bf16 %v1185, %v1183
      %v1270 = vpack.c.bf16 %v1186, %v1184
      %v1271 = vpack.c.bf16 %v1189, %v1187
      %v1272 = vpack.c.bf16 %v1190, %v1188
      %v1273 = vpack.c.bf16 %v1193, %v1191
      %v1274 = vpack.c.bf16 %v1194, %v1192
      %v1335 = vunpack.c.l.b16 %v1195
      %v1336 = vunpack.c.h.b16 %v1195
      %v1337 = vunpack.c.l.b16 %v1196
      %v1338 = vunpack.c.h.b16 %v1196
      %v1339 = vunpack.c.l.b16 %v1197
      %v1340 = vunpack.c.h.b16 %v1197
      %v1341 = vunpack.c.l.b16 %v1198
      %v1342 = vunpack.c.h.b16 %v1198
      %v1343 = vunpack.c.l.b16 %v1199
      %v1344 = vunpack.c.h.b16 %v1199
      %v1345 = vunpack.c.l.b16 %v1200
      %v1346 = vunpack.c.h.b16 %v1200
      %v1347 = vunpack.c.l.b16 %v1201
      %v1348 = vunpack.c.h.b16 %v1201
      %v1349 = vunpack.c.l.b16 %v1202
      %v1350 = vunpack.c.h.b16 %v1202
      %v1351 = vunpack.c.l.b16 %v1203
      %v1352 = vunpack.c.h.b16 %v1203
      %v1353 = vunpack.c.l.b16 %v1204
      %v1354 = vunpack.c.h.b16 %v1204
      %v1355 = vunpack.c.l.b16 %v1205
      %v1356 = vunpack.c.h.b16 %v1205
      %v1357 = vunpack.c.l.b16 %v1206
      %v1358 = vunpack.c.h.b16 %v1206
      %v1359 = vunpack.c.l.b16 %v1207
      %v1360 = vunpack.c.h.b16 %v1207
      %v1361 = vunpack.c.l.b16 %v1208
      %v1362 = vunpack.c.h.b16 %v1208
      %v1363 = vunpack.c.l.b16 %v1209
      %v1364 = vunpack.c.h.b16 %v1209
      %v1365 = vunpack.c.l.b16 %v1210
      %v1366 = vunpack.c.h.b16 %v1210
      %v1367 = vunpack.c.l.b16 %v1211
      %v1368 = vunpack.c.h.b16 %v1211
      %v1369 = vunpack.c.l.b16 %v1212
      %v1370 = vunpack.c.h.b16 %v1212
      %v1371 = vunpack.c.l.b16 %v1213
      %v1372 = vunpack.c.h.b16 %v1213
      %v1373 = vunpack.c.l.b16 %v1214
      %v1374 = vunpack.c.h.b16 %v1214
      %v1375 = vunpack.c.l.b16 %v1215
      %v1376 = vunpack.c.h.b16 %v1215
      %v1377 = vunpack.c.l.b16 %v1216
      %v1378 = vunpack.c.h.b16 %v1216
      %v1379 = vunpack.c.l.b16 %v1217
      %v1380 = vunpack.c.h.b16 %v1217
      %v1381 = vunpack.c.l.b16 %v1218
      %v1382 = vunpack.c.h.b16 %v1218
      %v1383 = vunpack.c.l.b16 %v1219
      %v1384 = vunpack.c.h.b16 %v1219
      %v1385 = vunpack.c.l.b16 %v1220
      %v1386 = vunpack.c.h.b16 %v1220
      %v1387 = vunpack.c.l.b16 %v1221
      %v1388 = vunpack.c.h.b16 %v1221
      %v1389 = vunpack.c.l.b16 %v1222
      %v1390 = vunpack.c.h.b16 %v1222
      %v1391 = vunpack.c.l.b16 %v1223
      %v1392 = vunpack.c.h.b16 %v1223
      %v1393 = vunpack.c.l.b16 %v1224
      %v1394 = vunpack.c.h.b16 %v1224
      %v1395 = vunpack.c.l.b16 %v1225
      %v1396 = vunpack.c.h.b16 %v1225
      %v1397 = vunpack.c.l.b16 %v1226
      %v1398 = vunpack.c.h.b16 %v1226
      %v1399 = vunpack.c.l.b16 %v1227
      %v1400 = vunpack.c.h.b16 %v1227
      %v1401 = vunpack.c.l.b16 %v1228
      %v1402 = vunpack.c.h.b16 %v1228
      %v1403 = vunpack.c.l.b16 %v1229
      %v1404 = vunpack.c.h.b16 %v1229
      %v1405 = vunpack.c.l.b16 %v1230
      %v1406 = vunpack.c.h.b16 %v1230
      %v1407 = vunpack.c.l.b16 %v1231
      %v1408 = vunpack.c.h.b16 %v1231
      %v1409 = vunpack.c.l.b16 %v1232
      %v1410 = vunpack.c.h.b16 %v1232
      %v1411 = vunpack.c.l.b16 %v1233
      %v1412 = vunpack.c.h.b16 %v1233
      %v1413 = vunpack.c.l.b16 %v1234
      %v1414 = vunpack.c.h.b16 %v1234
      %v1415 = vunpack.c.l.b16 %v1235
      %v1416 = vunpack.c.h.b16 %v1235
      %v1417 = vunpack.c.l.b16 %v1236
      %v1418 = vunpack.c.h.b16 %v1236
      %v1419 = vunpack.c.l.b16 %v1237
      %v1420 = vunpack.c.h.b16 %v1237
      %v1421 = vunpack.c.l.b16 %v1238
      %v1422 = vunpack.c.h.b16 %v1238
      %v1423 = vunpack.c.l.b16 %v1239
      %v1424 = vunpack.c.h.b16 %v1239
      %v1425 = vunpack.c.l.b16 %v1240
      %v1426 = vunpack.c.h.b16 %v1240
      %v1427 = vunpack.c.l.b16 %v1241
      %v1428 = vunpack.c.h.b16 %v1241
      %v1429 = vunpack.c.l.b16 %v1242
      %v1430 = vunpack.c.h.b16 %v1242
      %v1431 = vunpack.c.l.b16 %v1243
      %v1432 = vunpack.c.h.b16 %v1243
      %v1433 = vunpack.c.l.b16 %v1244
      %v1434 = vunpack.c.h.b16 %v1244
      %v1435 = vunpack.c.l.b16 %v1245
      %v1436 = vunpack.c.h.b16 %v1245
      %v1437 = vunpack.c.l.b16 %v1246
      %v1438 = vunpack.c.h.b16 %v1246
      %v1439 = vunpack.c.l.b16 %v1247
      %v1440 = vunpack.c.h.b16 %v1247
      %v1441 = vunpack.c.l.b16 %v1248
      %v1442 = vunpack.c.h.b16 %v1248
      %v1443 = vunpack.c.l.b16 %v1249
      %v1444 = vunpack.c.h.b16 %v1249
      %v1445 = vunpack.c.l.b16 %v1250
      %v1446 = vunpack.c.h.b16 %v1250
      %v1447 = vunpack.c.l.b16 %v1251
      %v1448 = vunpack.c.h.b16 %v1251
      %v1449 = vunpack.c.l.b16 %v1252
      %v1450 = vunpack.c.h.b16 %v1252
      %v1451 = vunpack.c.l.b16 %v1253
      %v1452 = vunpack.c.h.b16 %v1253
      %v1453 = vunpack.c.l.b16 %v1254
      %v1454 = vunpack.c.h.b16 %v1254
      %v1455 = vpack.c.b16 %v1337, %v1335
      %v1456 = vpack.c.b16 %v1338, %v1336
      %v1457 = vpack.c.b16 %v1341, %v1339
      %v1458 = vpack.c.b16 %v1342, %v1340
      %v1459 = vpack.c.b16 %v1345, %v1343
      %v1460 = vpack.c.b16 %v1346, %v1344
      %v1461 = vpack.c.b16 %v1349, %v1347
      %v1462 = vpack.c.b16 %v1350, %v1348
      %v1463 = vpack.c.b16 %v1353, %v1351
      %v1464 = vpack.c.b16 %v1354, %v1352
      %v1465 = vpack.c.b16 %v1357, %v1355
      %v1466 = vpack.c.b16 %v1358, %v1356
      %v1467 = vpack.c.b16 %v1361, %v1359
      %v1468 = vpack.c.b16 %v1362, %v1360
      %v1469 = vpack.c.b16 %v1365, %v1363
      %v1470 = vpack.c.b16 %v1366, %v1364
      %v1471 = vpack.c.b16 %v1369, %v1367
      %v1472 = vpack.c.b16 %v1370, %v1368
      %v1473 = vpack.c.b16 %v1373, %v1371
      %v1474 = vpack.c.b16 %v1374, %v1372
      %v1475 = vpack.c.b16 %v1377, %v1375
      %v1476 = vpack.c.b16 %v1378, %v1376
      %v1477 = vpack.c.b16 %v1381, %v1379
      %v1478 = vpack.c.b16 %v1382, %v1380
      %v1479 = vpack.c.b16 %v1385, %v1383
      %v1480 = vpack.c.b16 %v1386, %v1384
      %v1481 = vpack.c.b16 %v1389, %v1387
      %v1482 = vpack.c.b16 %v1390, %v1388
      %v1483 = vpack.c.b16 %v1393, %v1391
      %v1484 = vpack.c.b16 %v1394, %v1392
      %v1485 = vpack.c.b16 %v1397, %v1395
      %v1486 = vpack.c.b16 %v1398, %v1396
      %v1487 = vpack.c.b16 %v1401, %v1399
      %v1488 = vpack.c.b16 %v1402, %v1400
      %v1489 = vpack.c.b16 %v1405, %v1403
      %v1490 = vpack.c.b16 %v1406, %v1404
      %v1491 = vpack.c.b16 %v1409, %v1407
      %v1492 = vpack.c.b16 %v1410, %v1408
      %v1493 = vpack.c.b16 %v1413, %v1411
      %v1494 = vpack.c.b16 %v1414, %v1412
      %v1495 = vpack.c.b16 %v1417, %v1415
      %v1496 = vpack.c.b16 %v1418, %v1416
      %v1497 = vpack.c.b16 %v1421, %v1419
      %v1498 = vpack.c.b16 %v1422, %v1420
      %v1499 = vpack.c.b16 %v1425, %v1423
      %v1500 = vpack.c.b16 %v1426, %v1424
      %v1501 = vpack.c.b16 %v1429, %v1427
      %v1502 = vpack.c.b16 %v1430, %v1428
      %v1503 = vpack.c.b16 %v1433, %v1431
      %v1504 = vpack.c.b16 %v1434, %v1432
      %v1505 = vpack.c.b16 %v1437, %v1435
      %v1506 = vpack.c.b16 %v1438, %v1436
      %v1507 = vpack.c.b16 %v1441, %v1439
      %v1508 = vpack.c.b16 %v1442, %v1440
      %v1509 = vpack.c.b16 %v1445, %v1443
      %v1510 = vpack.c.b16 %v1446, %v1444
      %v1511 = vpack.c.b16 %v1449, %v1447
      %v1512 = vpack.c.b16 %v1450, %v1448
      %v1513 = vpack.c.b16 %v1453, %v1451
      %v1514 = vpack.c.b16 %v1454, %v1452
      %vm1545 = vcmask 261120
      %v1547 = vsel %vm1545, %v1456, 0
      %v1550 = vsel %vm1545, %v1458, 0
      %v1553 = vsel %vm1545, %v1460, 0
      %v1556 = vsel %vm1545, %v1462, 0
      %v1559 = vsel %vm1545, %v1464, 0
      %v1562 = vsel %vm1545, %v1466, 0
      %v1565 = vsel %vm1545, %v1468, 0
      %v1568 = vsel %vm1545, %v1470, 0
      %v1571 = vsel %vm1545, %v1472, 0
      %v1574 = vsel %vm1545, %v1474, 0
      %v1577 = vsel %vm1545, %v1476, 0
      %v1580 = vsel %vm1545, %v1478, 0
      %v1583 = vsel %vm1545, %v1480, 0
      %v1586 = vsel %vm1545, %v1482, 0
      %v1589 = vsel %vm1545, %v1484, 0
      %v1592 = vsel %vm1545, %v1486, 0
      %v1595 = vsel %vm1545, %v1488, 0
      %v1598 = vsel %vm1545, %v1490, 0
      %v1601 = vsel %vm1545, %v1492, 0
      %v1604 = vsel %vm1545, %v1494, 0
      %v1607 = vsel %vm1545, %v1496, 0
      %v1610 = vsel %vm1545, %v1498, 0
      %v1613 = vsel %vm1545, %v1500, 0
      %v1616 = vsel %vm1545, %v1502, 0
      %v1619 = vsel %vm1545, %v1504, 0
      %v1622 = vsel %vm1545, %v1506, 0
      %v1625 = vsel %vm1545, %v1508, 0
      %v1628 = vsel %vm1545, %v1510, 0
      %v1631 = vsel %vm1545, %v1512, 0
      %v1634 = vsel %vm1545, %v1514, 0
      %1636 = vmatpush.bf16.msra.mxu0 %v1269
      %1637 = vmatpush.bf16.msra.mxu0 %v1267
      %1638 = vmatpush.bf16.msra.mxu0 %v1265
      %1639 = vmatpush.bf16.msra.mxu0 %v1263
      %1640 = vmatpush.bf16.msra.mxu0 %v1261
      %1641 = vmatpush.bf16.msra.mxu0 %v1259
      %1642 = vmatpush.bf16.msra.mxu0 %v1257
      %1643 = vmatpush.bf16.msra.mxu0 %v1255
      %1644 = vmatmul.bf16.gmra.mxu0 %v1455
      %v1645 = vpop.f32.mrf.mxu0
      %v1646 = vadd.f32 0.0, %v1645
      %v1647 = vpop.f32.mrf.mxu0
      %v1648 = vadd.f32 0.0, %v1647
      %1649 = vmatmul.bf16.gmra.mxu0 %v1457
      %v1650 = vpop.f32.mrf.mxu0
      %v1651 = vadd.f32 0.0, %v1650
      %v1652 = vpop.f32.mrf.mxu0
      %v1653 = vadd.f32 0.0, %v1652
      %1654 = vmatmul.bf16.gmra.mxu0 %v1459
      %v1655 = vpop.f32.mrf.mxu0
      %v1656 = vadd.f32 0.0, %v1655
      %v1657 = vpop.f32.mrf.mxu0
      %v1658 = vadd.f32 0.0, %v1657
      %1659 = vmatmul.bf16.gmra.mxu0 %v1461
      %v1660 = vpop.f32.mrf.mxu0
      %v1661 = vadd.f32 0.0, %v1660
      %v1662 = vpop.f32.mrf.mxu0
      %v1663 = vadd.f32 0.0, %v1662
      %1664 = vmatmul.bf16.gmra.mxu0 %v1463
      %v1665 = vpop.f32.mrf.mxu0
      %v1666 = vadd.f32 0.0, %v1665
      %v1667 = vpop.f32.mrf.mxu0
      %v1668 = vadd.f32 0.0, %v1667
      %1669 = vmatmul.bf16.gmra.mxu0 %v1465
      %v1670 = vpop.f32.mrf.mxu0
      %v1671 = vadd.f32 0.0, %v1670
      %v1672 = vpop.f32.mrf.mxu0
      %v1673 = vadd.f32 0.0, %v1672
      %1674 = vmatmul.bf16.gmra.mxu0 %v1467
      %v1675 = vpop.f32.mrf.mxu0
      %v1676 = vadd.f32 0.0, %v1675
      %v1677 = vpop.f32.mrf.mxu0
      %v1678 = vadd.f32 0.0, %v1677
      %1679 = vmatmul.bf16.gmra.mxu0 %v1469
      %v1680 = vpop.f32.mrf.mxu0
      %v1681 = vadd.f32 0.0, %v1680
      %v1682 = vpop.f32.mrf.mxu0
      %v1683 = vadd.f32 0.0, %v1682
      %1684 = vmatmul.bf16.gmra.mxu0 %v1471
      %v1685 = vpop.f32.mrf.mxu0
      %v1686 = vadd.f32 0.0, %v1685
      %v1687 = vpop.f32.mrf.mxu0
      %v1688 = vadd.f32 0.0, %v1687
      %1689 = vmatmul.bf16.gmra.mxu0 %v1473
      %v1690 = vpop.f32.mrf.mxu0
      %v1691 = vadd.f32 0.0, %v1690
      %v1692 = vpop.f32.mrf.mxu0
      %v1693 = vadd.f32 0.0, %v1692
      %1694 = vmatmul.bf16.gmra.mxu0 %v1475
      %v1695 = vpop.f32.mrf.mxu0
      %v1696 = vadd.f32 0.0, %v1695
      %v1697 = vpop.f32.mrf.mxu0
      %v1698 = vadd.f32 0.0, %v1697
      %1699 = vmatmul.bf16.gmra.mxu0 %v1477
      %v1700 = vpop.f32.mrf.mxu0
      %v1701 = vadd.f32 0.0, %v1700
      %v1702 = vpop.f32.mrf.mxu0
      %v1703 = vadd.f32 0.0, %v1702
      %1704 = vmatmul.bf16.gmra.mxu0 %v1479
      %v1705 = vpop.f32.mrf.mxu0
      %v1706 = vadd.f32 0.0, %v1705
      %v1707 = vpop.f32.mrf.mxu0
      %v1708 = vadd.f32 0.0, %v1707
      %1709 = vmatmul.bf16.gmra.mxu0 %v1481
      %v1710 = vpop.f32.mrf.mxu0
      %v1711 = vadd.f32 0.0, %v1710
      %v1712 = vpop.f32.mrf.mxu0
      %v1713 = vadd.f32 0.0, %v1712
      %1714 = vmatmul.bf16.gmra.mxu0 %v1483
      %v1715 = vpop.f32.mrf.mxu0
      %v1716 = vadd.f32 0.0, %v1715
      %v1717 = vpop.f32.mrf.mxu0
      %v1718 = vadd.f32 0.0, %v1717
      %1719 = vmatmul.bf16.gmra.mxu0 %v1485
      %v1720 = vpop.f32.mrf.mxu0
      %v1721 = vadd.f32 0.0, %v1720
      %v1722 = vpop.f32.mrf.mxu0
      %v1723 = vadd.f32 0.0, %v1722
      %1724 = vmatmul.bf16.gmra.mxu0 %v1487
      %v1725 = vpop.f32.mrf.mxu0
      %v1726 = vadd.f32 0.0, %v1725
      %v1727 = vpop.f32.mrf.mxu0
      %v1728 = vadd.f32 0.0, %v1727
      %1729 = vmatmul.bf16.gmra.mxu0 %v1489
      %v1730 = vpop.f32.mrf.mxu0
      %v1731 = vadd.f32 0.0, %v1730
      %v1732 = vpop.f32.mrf.mxu0
      %v1733 = vadd.f32 0.0, %v1732
      %1734 = vmatmul.bf16.gmra.mxu0 %v1491
      %v1735 = vpop.f32.mrf.mxu0
      %v1736 = vadd.f32 0.0, %v1735
      %v1737 = vpop.f32.mrf.mxu0
      %v1738 = vadd.f32 0.0, %v1737
      %1739 = vmatmul.bf16.gmra.mxu0 %v1493
      %v1740 = vpop.f32.mrf.mxu0
      %v1741 = vadd.f32 0.0, %v1740
      %v1742 = vpop.f32.mrf.mxu0
      %v1743 = vadd.f32 0.0, %v1742
      %1744 = vmatmul.bf16.gmra.mxu0 %v1495
      %v1745 = vpop.f32.mrf.mxu0
      %v1746 = vadd.f32 0.0, %v1745
      %v1747 = vpop.f32.mrf.mxu0
      %v1748 = vadd.f32 0.0, %v1747
      %1749 = vmatmul.bf16.gmra.mxu0 %v1497
      %v1750 = vpop.f32.mrf.mxu0
      %v1751 = vadd.f32 0.0, %v1750
      %v1752 = vpop.f32.mrf.mxu0
      %v1753 = vadd.f32 0.0, %v1752
      %1754 = vmatmul.bf16.gmra.mxu0 %v1499
      %v1755 = vpop.f32.mrf.mxu0
      %v1756 = vadd.f32 0.0, %v1755
      %v1757 = vpop.f32.mrf.mxu0
      %v1758 = vadd.f32 0.0, %v1757
      %1759 = vmatmul.bf16.gmra.mxu0 %v1501
      %v1760 = vpop.f32.mrf.mxu0
      %v1761 = vadd.f32 0.0, %v1760
      %v1762 = vpop.f32.mrf.mxu0
      %v1763 = vadd.f32 0.0, %v1762
      %1764 = vmatmul.bf16.gmra.mxu0 %v1503
      %v1765 = vpop.f32.mrf.mxu0
      %v1766 = vadd.f32 0.0, %v1765
      %v1767 = vpop.f32.mrf.mxu0
      %v1768 = vadd.f32 0.0, %v1767
      %1769 = vmatmul.bf16.gmra.mxu0 %v1505
      %v1770 = vpop.f32.mrf.mxu0
      %v1771 = vadd.f32 0.0, %v1770
      %v1772 = vpop.f32.mrf.mxu0
      %v1773 = vadd.f32 0.0, %v1772
      %1774 = vmatmul.bf16.gmra.mxu0 %v1507
      %v1775 = vpop.f32.mrf.mxu0
      %v1776 = vadd.f32 0.0, %v1775
      %v1777 = vpop.f32.mrf.mxu0
      %v1778 = vadd.f32 0.0, %v1777
      %1779 = vmatmul.bf16.gmra.mxu0 %v1509
      %v1780 = vpop.f32.mrf.mxu0
      %v1781 = vadd.f32 0.0, %v1780
      %v1782 = vpop.f32.mrf.mxu0
      %v1783 = vadd.f32 0.0, %v1782
      %1784 = vmatmul.bf16.gmra.mxu0 %v1511
      %v1785 = vpop.f32.mrf.mxu0
      %v1786 = vadd.f32 0.0, %v1785
      %v1787 = vpop.f32.mrf.mxu0
      %v1788 = vadd.f32 0.0, %v1787
      %1789 = vmatmul.bf16.gmra.mxu0 %v1513
      %v1790 = vpop.f32.mrf.mxu0
      %v1791 = vadd.f32 0.0, %v1790
      %v1792 = vpop.f32.mrf.mxu0
      %v1793 = vadd.f32 0.0, %v1792
      %1794 = vdwg.mxu0
      %1795 = vmatpush.bf16.msra.mxu0 0
      %1796 = vmatpush.bf16.msra.mxu0 0
      %1797 = vmatpush.bf16.msra.mxu0 0
      %1798 = vmatpush.bf16.msra.mxu0 0
      %1799 = vmatpush.bf16.msra.mxu0 0
      %1800 = vmatpush.bf16.msra.mxu0 0
      %1801 = vmatpush.bf16.msra.mxu0 %v1273
      %1802 = vmatpush.bf16.msra.mxu0 %v1271
      %1803 = vmatmul.bf16.gmra.mxu0 %v1547
      %v1804 = vpop.f32.mrf.mxu0
      %v1805 = vadd.f32 %v1646, %v1804
      %v1806 = vpop.f32.mrf.mxu0
      %v1807 = vadd.f32 %v1648, %v1806
      %1808 = vmatmul.bf16.gmra.mxu0 %v1550
      %v1809 = vpop.f32.mrf.mxu0
      %v1810 = vadd.f32 %v1651, %v1809
      %v1811 = vpop.f32.mrf.mxu0
      %v1812 = vadd.f32 %v1653, %v1811
      %1813 = vmatmul.bf16.gmra.mxu0 %v1553
      %v1814 = vpop.f32.mrf.mxu0
      %v1815 = vadd.f32 %v1656, %v1814
      %v1816 = vpop.f32.mrf.mxu0
      %v1817 = vadd.f32 %v1658, %v1816
      %1818 = vmatmul.bf16.gmra.mxu0 %v1556
      %v1819 = vpop.f32.mrf.mxu0
      %v1820 = vadd.f32 %v1661, %v1819
      %v1821 = vpop.f32.mrf.mxu0
      %v1822 = vadd.f32 %v1663, %v1821
      %1823 = vmatmul.bf16.gmra.mxu0 %v1559
      %v1824 = vpop.f32.mrf.mxu0
      %v1825 = vadd.f32 %v1666, %v1824
      %v1826 = vpop.f32.mrf.mxu0
      %v1827 = vadd.f32 %v1668, %v1826
      %1828 = vmatmul.bf16.gmra.mxu0 %v1562
      %v1829 = vpop.f32.mrf.mxu0
      %v1830 = vadd.f32 %v1671, %v1829
      %v1831 = vpop.f32.mrf.mxu0
      %v1832 = vadd.f32 %v1673, %v1831
      %1833 = vmatmul.bf16.gmra.mxu0 %v1565
      %v1834 = vpop.f32.mrf.mxu0
      %v1835 = vadd.f32 %v1676, %v1834
      %v1836 = vpop.f32.mrf.mxu0
      %v1837 = vadd.f32 %v1678, %v1836
      %1838 = vmatmul.bf16.gmra.mxu0 %v1568
      %v1839 = vpop.f32.mrf.mxu0
      %v1840 = vadd.f32 %v1681, %v1839
      %v1841 = vpop.f32.mrf.mxu0
      %v1842 = vadd.f32 %v1683, %v1841
      %1843 = vmatmul.bf16.gmra.mxu0 %v1571
      %v1844 = vpop.f32.mrf.mxu0
      %v1845 = vadd.f32 %v1686, %v1844
      %v1846 = vpop.f32.mrf.mxu0
      %v1847 = vadd.f32 %v1688, %v1846
      %1848 = vmatmul.bf16.gmra.mxu0 %v1574
      %v1849 = vpop.f32.mrf.mxu0
      %v1850 = vadd.f32 %v1691, %v1849
      %v1851 = vpop.f32.mrf.mxu0
      %v1852 = vadd.f32 %v1693, %v1851
      %1853 = vmatmul.bf16.gmra.mxu0 %v1577
      %v1854 = vpop.f32.mrf.mxu0
      %v1855 = vadd.f32 %v1696, %v1854
      %v1856 = vpop.f32.mrf.mxu0
      %v1857 = vadd.f32 %v1698, %v1856
      %1858 = vmatmul.bf16.gmra.mxu0 %v1580
      %v1859 = vpop.f32.mrf.mxu0
      %v1860 = vadd.f32 %v1701, %v1859
      %v1861 = vpop.f32.mrf.mxu0
      %v1862 = vadd.f32 %v1703, %v1861
      %1863 = vmatmul.bf16.gmra.mxu0 %v1583
      %v1864 = vpop.f32.mrf.mxu0
      %v1865 = vadd.f32 %v1706, %v1864
      %v1866 = vpop.f32.mrf.mxu0
      %v1867 = vadd.f32 %v1708, %v1866
      %1868 = vmatmul.bf16.gmra.mxu0 %v1586
      %v1869 = vpop.f32.mrf.mxu0
      %v1870 = vadd.f32 %v1711, %v1869
      %v1871 = vpop.f32.mrf.mxu0
      %v1872 = vadd.f32 %v1713, %v1871
      %1873 = vmatmul.bf16.gmra.mxu0 %v1589
      %v1874 = vpop.f32.mrf.mxu0
      %v1875 = vadd.f32 %v1716, %v1874
      %v1876 = vpop.f32.mrf.mxu0
      %v1877 = vadd.f32 %v1718, %v1876
      %1878 = vmatmul.bf16.gmra.mxu0 %v1592
      %v1879 = vpop.f32.mrf.mxu0
      %v1880 = vadd.f32 %v1721, %v1879
      %v1881 = vpop.f32.mrf.mxu0
      %v1882 = vadd.f32 %v1723, %v1881
      %1883 = vmatmul.bf16.gmra.mxu0 %v1595
      %v1884 = vpop.f32.mrf.mxu0
      %v1885 = vadd.f32 %v1726, %v1884
      %v1886 = vpop.f32.mrf.mxu0
      %v1887 = vadd.f32 %v1728, %v1886
      %1888 = vmatmul.bf16.gmra.mxu0 %v1598
      %v1889 = vpop.f32.mrf.mxu0
      %v1890 = vadd.f32 %v1731, %v1889
      %v1891 = vpop.f32.mrf.mxu0
      %v1892 = vadd.f32 %v1733, %v1891
      %1893 = vmatmul.bf16.gmra.mxu0 %v1601
      %v1894 = vpop.f32.mrf.mxu0
      %v1895 = vadd.f32 %v1736, %v1894
      %v1896 = vpop.f32.mrf.mxu0
      %v1897 = vadd.f32 %v1738, %v1896
      %1898 = vmatmul.bf16.gmra.mxu0 %v1604
      %v1899 = vpop.f32.mrf.mxu0
      %v1900 = vadd.f32 %v1741, %v1899
      %v1901 = vpop.f32.mrf.mxu0
      %v1902 = vadd.f32 %v1743, %v1901
      %1903 = vmatmul.bf16.gmra.mxu0 %v1607
      %v1904 = vpop.f32.mrf.mxu0
      %v1905 = vadd.f32 %v1746, %v1904
      %v1906 = vpop.f32.mrf.mxu0
      %v1907 = vadd.f32 %v1748, %v1906
      %1908 = vmatmul.bf16.gmra.mxu0 %v1610
      %v1909 = vpop.f32.mrf.mxu0
      %v1910 = vadd.f32 %v1751, %v1909
      %v1911 = vpop.f32.mrf.mxu0
      %v1912 = vadd.f32 %v1753, %v1911
      %1913 = vmatmul.bf16.gmra.mxu0 %v1613
      %v1914 = vpop.f32.mrf.mxu0
      %v1915 = vadd.f32 %v1756, %v1914
      %v1916 = vpop.f32.mrf.mxu0
      %v1917 = vadd.f32 %v1758, %v1916
      %1918 = vmatmul.bf16.gmra.mxu0 %v1616
      %v1919 = vpop.f32.mrf.mxu0
      %v1920 = vadd.f32 %v1761, %v1919
      %v1921 = vpop.f32.mrf.mxu0
      %v1922 = vadd.f32 %v1763, %v1921
      %1923 = vmatmul.bf16.gmra.mxu0 %v1619
      %v1924 = vpop.f32.mrf.mxu0
      %v1925 = vadd.f32 %v1766, %v1924
      %v1926 = vpop.f32.mrf.mxu0
      %v1927 = vadd.f32 %v1768, %v1926
      %1928 = vmatmul.bf16.gmra.mxu0 %v1622
      %v1929 = vpop.f32.mrf.mxu0
      %v1930 = vadd.f32 %v1771, %v1929
      %v1931 = vpop.f32.mrf.mxu0
      %v1932 = vadd.f32 %v1773, %v1931
      %1933 = vmatmul.bf16.gmra.mxu0 %v1625
      %v1934 = vpop.f32.mrf.mxu0
      %v1935 = vadd.f32 %v1776, %v1934
      %v1936 = vpop.f32.mrf.mxu0
      %v1937 = vadd.f32 %v1778, %v1936
      %1938 = vmatmul.bf16.gmra.mxu0 %v1628
      %v1939 = vpop.f32.mrf.mxu0
      %v1940 = vadd.f32 %v1781, %v1939
      %v1941 = vpop.f32.mrf.mxu0
      %v1942 = vadd.f32 %v1783, %v1941
      %1943 = vmatmul.bf16.gmra.mxu0 %v1631
      %v1944 = vpop.f32.mrf.mxu0
      %v1945 = vadd.f32 %v1786, %v1944
      %v1946 = vpop.f32.mrf.mxu0
      %v1947 = vadd.f32 %v1788, %v1946
      %1948 = vmatmul.bf16.gmra.mxu0 %v1634
      %v1949 = vpop.f32.mrf.mxu0
      %v1950 = vadd.f32 %v1791, %v1949
      %v1951 = vpop.f32.mrf.mxu0
      %v1952 = vadd.f32 %v1793, %v1951
      %1953 = vdwg.mxu0
      %1954 = vmatpush.bf16.msra.mxu0 %v1270
      %1955 = vmatpush.bf16.msra.mxu0 %v1268
      %1956 = vmatpush.bf16.msra.mxu0 %v1266
      %1957 = vmatpush.bf16.msra.mxu0 %v1264
      %1958 = vmatpush.bf16.msra.mxu0 %v1262
      %1959 = vmatpush.bf16.msra.mxu0 %v1260
      %1960 = vmatpush.bf16.msra.mxu0 %v1258
      %1961 = vmatpush.bf16.msra.mxu0 %v1256
      %1962 = vmatmul.bf16.gmra.mxu0 %v1455
      %v1963 = vpop.f32.mrf.mxu0
      %v1964 = vadd.f32 0.0, %v1963
      %v1965 = vpop.f32.mrf.mxu0
      %v1966 = vadd.f32 0.0, %v1965
      %1967 = vmatmul.bf16.gmra.mxu0 %v1457
      %v1968 = vpop.f32.mrf.mxu0
      %v1969 = vadd.f32 0.0, %v1968
      %v1970 = vpop.f32.mrf.mxu0
      %v1971 = vadd.f32 0.0, %v1970
      %1972 = vmatmul.bf16.gmra.mxu0 %v1459
      %v1973 = vpop.f32.mrf.mxu0
      %v1974 = vadd.f32 0.0, %v1973
      %v1975 = vpop.f32.mrf.mxu0
      %v1976 = vadd.f32 0.0, %v1975
      %1977 = vmatmul.bf16.gmra.mxu0 %v1461
      %v1978 = vpop.f32.mrf.mxu0
      %v1979 = vadd.f32 0.0, %v1978
      %v1980 = vpop.f32.mrf.mxu0
      %v1981 = vadd.f32 0.0, %v1980
      %1982 = vmatmul.bf16.gmra.mxu0 %v1463
      %v1983 = vpop.f32.mrf.mxu0
      %v1984 = vadd.f32 0.0, %v1983
      %v1985 = vpop.f32.mrf.mxu0
      %v1986 = vadd.f32 0.0, %v1985
      %1987 = vmatmul.bf16.gmra.mxu0 %v1465
      %v1988 = vpop.f32.mrf.mxu0
      %v1989 = vadd.f32 0.0, %v1988
      %v1990 = vpop.f32.mrf.mxu0
      %v1991 = vadd.f32 0.0, %v1990
      %1992 = vmatmul.bf16.gmra.mxu0 %v1467
      %v1993 = vpop.f32.mrf.mxu0
      %v1994 = vadd.f32 0.0, %v1993
      %v1995 = vpop.f32.mrf.mxu0
      %v1996 = vadd.f32 0.0, %v1995
      %1997 = vmatmul.bf16.gmra.mxu0 %v1469
      %v1998 = vpop.f32.mrf.mxu0
      %v1999 = vadd.f32 0.0, %v1998
      %v2000 = vpop.f32.mrf.mxu0
      %v2001 = vadd.f32 0.0, %v2000
      %2002 = vmatmul.bf16.gmra.mxu0 %v1471
      %v2003 = vpop.f32.mrf.mxu0
      %v2004 = vadd.f32 0.0, %v2003
      %v2005 = vpop.f32.mrf.mxu0
      %v2006 = vadd.f32 0.0, %v2005
      %2007 = vmatmul.bf16.gmra.mxu0 %v1473
      %v2008 = vpop.f32.mrf.mxu0
      %v2009 = vadd.f32 0.0, %v2008
      %v2010 = vpop.f32.mrf.mxu0
      %v2011 = vadd.f32 0.0, %v2010
      %2012 = vmatmul.bf16.gmra.mxu0 %v1475
      %v2013 = vpop.f32.mrf.mxu0
      %v2014 = vadd.f32 0.0, %v2013
      %v2015 = vpop.f32.mrf.mxu0
      %v2016 = vadd.f32 0.0, %v2015
      %2017 = vmatmul.bf16.gmra.mxu0 %v1477
      %v2018 = vpop.f32.mrf.mxu0
      %v2019 = vadd.f32 0.0, %v2018
      %v2020 = vpop.f32.mrf.mxu0
      %v2021 = vadd.f32 0.0, %v2020
      %2022 = vmatmul.bf16.gmra.mxu0 %v1479
      %v2023 = vpop.f32.mrf.mxu0
      %v2024 = vadd.f32 0.0, %v2023
      %v2025 = vpop.f32.mrf.mxu0
      %v2026 = vadd.f32 0.0, %v2025
      %2027 = vmatmul.bf16.gmra.mxu0 %v1481
      %v2028 = vpop.f32.mrf.mxu0
      %v2029 = vadd.f32 0.0, %v2028
      %v2030 = vpop.f32.mrf.mxu0
      %v2031 = vadd.f32 0.0, %v2030
      %2032 = vmatmul.bf16.gmra.mxu0 %v1483
      %v2033 = vpop.f32.mrf.mxu0
      %v2034 = vadd.f32 0.0, %v2033
      %v2035 = vpop.f32.mrf.mxu0
      %v2036 = vadd.f32 0.0, %v2035
      %2037 = vmatmul.bf16.gmra.mxu0 %v1485
      %v2038 = vpop.f32.mrf.mxu0
      %v2039 = vadd.f32 0.0, %v2038
      %v2040 = vpop.f32.mrf.mxu0
      %v2041 = vadd.f32 0.0, %v2040
      %2042 = vmatmul.bf16.gmra.mxu0 %v1487
      %v2043 = vpop.f32.mrf.mxu0
      %v2044 = vadd.f32 0.0, %v2043
      %v2045 = vpop.f32.mrf.mxu0
      %v2046 = vadd.f32 0.0, %v2045
      %2047 = vmatmul.bf16.gmra.mxu0 %v1489
      %v2048 = vpop.f32.mrf.mxu0
      %v2049 = vadd.f32 0.0, %v2048
      %v2050 = vpop.f32.mrf.mxu0
      %v2051 = vadd.f32 0.0, %v2050
      %2052 = vmatmul.bf16.gmra.mxu0 %v1491
      %v2053 = vpop.f32.mrf.mxu0
      %v2054 = vadd.f32 0.0, %v2053
      %v2055 = vpop.f32.mrf.mxu0
      %v2056 = vadd.f32 0.0, %v2055
      %2057 = vmatmul.bf16.gmra.mxu0 %v1493
      %v2058 = vpop.f32.mrf.mxu0
      %v2059 = vadd.f32 0.0, %v2058
      %v2060 = vpop.f32.mrf.mxu0
      %v2061 = vadd.f32 0.0, %v2060
      %2062 = vmatmul.bf16.gmra.mxu0 %v1495
      %v2063 = vpop.f32.mrf.mxu0
      %v2064 = vadd.f32 0.0, %v2063
      %v2065 = vpop.f32.mrf.mxu0
      %v2066 = vadd.f32 0.0, %v2065
      %2067 = vmatmul.bf16.gmra.mxu0 %v1497
      %v2068 = vpop.f32.mrf.mxu0
      %v2069 = vadd.f32 0.0, %v2068
      %v2070 = vpop.f32.mrf.mxu0
      %v2071 = vadd.f32 0.0, %v2070
      %2072 = vmatmul.bf16.gmra.mxu0 %v1499
      %v2073 = vpop.f32.mrf.mxu0
      %v2074 = vadd.f32 0.0, %v2073
      %v2075 = vpop.f32.mrf.mxu0
      %v2076 = vadd.f32 0.0, %v2075
      %2077 = vmatmul.bf16.gmra.mxu0 %v1501
      %v2078 = vpop.f32.mrf.mxu0
      %v2079 = vadd.f32 0.0, %v2078
      %v2080 = vpop.f32.mrf.mxu0
      %v2081 = vadd.f32 0.0, %v2080
      %2082 = vmatmul.bf16.gmra.mxu0 %v1503
      %v2083 = vpop.f32.mrf.mxu0
      %v2084 = vadd.f32 0.0, %v2083
      %v2085 = vpop.f32.mrf.mxu0
      %v2086 = vadd.f32 0.0, %v2085
      %2087 = vmatmul.bf16.gmra.mxu0 %v1505
      %v2088 = vpop.f32.mrf.mxu0
      %v2089 = vadd.f32 0.0, %v2088
      %v2090 = vpop.f32.mrf.mxu0
      %v2091 = vadd.f32 0.0, %v2090
      %2092 = vmatmul.bf16.gmra.mxu0 %v1507
      %v2093 = vpop.f32.mrf.mxu0
      %v2094 = vadd.f32 0.0, %v2093
      %v2095 = vpop.f32.mrf.mxu0
      %v2096 = vadd.f32 0.0, %v2095
      %2097 = vmatmul.bf16.gmra.mxu0 %v1509
      %v2098 = vpop.f32.mrf.mxu0
      %v2099 = vadd.f32 0.0, %v2098
      %v2100 = vpop.f32.mrf.mxu0
      %v2101 = vadd.f32 0.0, %v2100
      %2102 = vmatmul.bf16.gmra.mxu0 %v1511
      %v2103 = vpop.f32.mrf.mxu0
      %v2104 = vadd.f32 0.0, %v2103
      %v2105 = vpop.f32.mrf.mxu0
      %v2106 = vadd.f32 0.0, %v2105
      %2107 = vmatmul.bf16.gmra.mxu0 %v1513
      %v2108 = vpop.f32.mrf.mxu0
      %v2109 = vadd.f32 0.0, %v2108
      %v2110 = vpop.f32.mrf.mxu0
      %v2111 = vadd.f32 0.0, %v2110
      %2112 = vdwg.mxu0
      %2113 = vmatpush.bf16.msra.mxu0 0
      %2114 = vmatpush.bf16.msra.mxu0 0
      %2115 = vmatpush.bf16.msra.mxu0 0
      %2116 = vmatpush.bf16.msra.mxu0 0
      %2117 = vmatpush.bf16.msra.mxu0 0
      %2118 = vmatpush.bf16.msra.mxu0 0
      %2119 = vmatpush.bf16.msra.mxu0 %v1274
      %2120 = vmatpush.bf16.msra.mxu0 %v1272
      %2121 = vmatmul.bf16.gmra.mxu0 %v1547
      %v2122 = vpop.f32.mrf.mxu0
      %v2123 = vadd.f32 %v1964, %v2122
      %v2124 = vpop.f32.mrf.mxu0
      %v2125 = vadd.f32 %v1966, %v2124
      %2126 = vmatmul.bf16.gmra.mxu0 %v1550
      %v2127 = vpop.f32.mrf.mxu0
      %v2128 = vadd.f32 %v1969, %v2127
      %v2129 = vpop.f32.mrf.mxu0
      %v2130 = vadd.f32 %v1971, %v2129
      %2131 = vmatmul.bf16.gmra.mxu0 %v1553
      %v2132 = vpop.f32.mrf.mxu0
      %v2133 = vadd.f32 %v1974, %v2132
      %v2134 = vpop.f32.mrf.mxu0
      %v2135 = vadd.f32 %v1976, %v2134
      %2136 = vmatmul.bf16.gmra.mxu0 %v1556
      %v2137 = vpop.f32.mrf.mxu0
      %v2138 = vadd.f32 %v1979, %v2137
      %v2139 = vpop.f32.mrf.mxu0
      %v2140 = vadd.f32 %v1981, %v2139
      %2141 = vmatmul.bf16.gmra.mxu0 %v1559
      %v2142 = vpop.f32.mrf.mxu0
      %v2143 = vadd.f32 %v1984, %v2142
      %v2144 = vpop.f32.mrf.mxu0
      %v2145 = vadd.f32 %v1986, %v2144
      %2146 = vmatmul.bf16.gmra.mxu0 %v1562
      %v2147 = vpop.f32.mrf.mxu0
      %v2148 = vadd.f32 %v1989, %v2147
      %v2149 = vpop.f32.mrf.mxu0
      %v2150 = vadd.f32 %v1991, %v2149
      %2151 = vmatmul.bf16.gmra.mxu0 %v1565
      %v2152 = vpop.f32.mrf.mxu0
      %v2153 = vadd.f32 %v1994, %v2152
      %v2154 = vpop.f32.mrf.mxu0
      %v2155 = vadd.f32 %v1996, %v2154
      %2156 = vmatmul.bf16.gmra.mxu0 %v1568
      %v2157 = vpop.f32.mrf.mxu0
      %v2158 = vadd.f32 %v1999, %v2157
      %v2159 = vpop.f32.mrf.mxu0
      %v2160 = vadd.f32 %v2001, %v2159
      %2161 = vmatmul.bf16.gmra.mxu0 %v1571
      %v2162 = vpop.f32.mrf.mxu0
      %v2163 = vadd.f32 %v2004, %v2162
      %v2164 = vpop.f32.mrf.mxu0
      %v2165 = vadd.f32 %v2006, %v2164
      %2166 = vmatmul.bf16.gmra.mxu0 %v1574
      %v2167 = vpop.f32.mrf.mxu0
      %v2168 = vadd.f32 %v2009, %v2167
      %v2169 = vpop.f32.mrf.mxu0
      %v2170 = vadd.f32 %v2011, %v2169
      %2171 = vmatmul.bf16.gmra.mxu0 %v1577
      %v2172 = vpop.f32.mrf.mxu0
      %v2173 = vadd.f32 %v2014, %v2172
      %v2174 = vpop.f32.mrf.mxu0
      %v2175 = vadd.f32 %v2016, %v2174
      %2176 = vmatmul.bf16.gmra.mxu0 %v1580
      %v2177 = vpop.f32.mrf.mxu0
      %v2178 = vadd.f32 %v2019, %v2177
      %v2179 = vpop.f32.mrf.mxu0
      %v2180 = vadd.f32 %v2021, %v2179
      %2181 = vmatmul.bf16.gmra.mxu0 %v1583
      %v2182 = vpop.f32.mrf.mxu0
      %v2183 = vadd.f32 %v2024, %v2182
      %v2184 = vpop.f32.mrf.mxu0
      %v2185 = vadd.f32 %v2026, %v2184
      %2186 = vmatmul.bf16.gmra.mxu0 %v1586
      %v2187 = vpop.f32.mrf.mxu0
      %v2188 = vadd.f32 %v2029, %v2187
      %v2189 = vpop.f32.mrf.mxu0
      %v2190 = vadd.f32 %v2031, %v2189
      %2191 = vmatmul.bf16.gmra.mxu0 %v1589
      %v2192 = vpop.f32.mrf.mxu0
      %v2193 = vadd.f32 %v2034, %v2192
      %v2194 = vpop.f32.mrf.mxu0
      %v2195 = vadd.f32 %v2036, %v2194
      %2196 = vmatmul.bf16.gmra.mxu0 %v1592
      %v2197 = vpop.f32.mrf.mxu0
      %v2198 = vadd.f32 %v2039, %v2197
      %v2199 = vpop.f32.mrf.mxu0
      %v2200 = vadd.f32 %v2041, %v2199
      %2201 = vmatmul.bf16.gmra.mxu0 %v1595
      %v2202 = vpop.f32.mrf.mxu0
      %v2203 = vadd.f32 %v2044, %v2202
      %v2204 = vpop.f32.mrf.mxu0
      %v2205 = vadd.f32 %v2046, %v2204
      %2206 = vmatmul.bf16.gmra.mxu0 %v1598
      %v2207 = vpop.f32.mrf.mxu0
      %v2208 = vadd.f32 %v2049, %v2207
      %v2209 = vpop.f32.mrf.mxu0
      %v2210 = vadd.f32 %v2051, %v2209
      %2211 = vmatmul.bf16.gmra.mxu0 %v1601
      %v2212 = vpop.f32.mrf.mxu0
      %v2213 = vadd.f32 %v2054, %v2212
      %v2214 = vpop.f32.mrf.mxu0
      %v2215 = vadd.f32 %v2056, %v2214
      %2216 = vmatmul.bf16.gmra.mxu0 %v1604
      %v2217 = vpop.f32.mrf.mxu0
      %v2218 = vadd.f32 %v2059, %v2217
      %v2219 = vpop.f32.mrf.mxu0
      %v2220 = vadd.f32 %v2061, %v2219
      %2221 = vmatmul.bf16.gmra.mxu0 %v1607
      %v2222 = vpop.f32.mrf.mxu0
      %v2223 = vadd.f32 %v2064, %v2222
      %v2224 = vpop.f32.mrf.mxu0
      %v2225 = vadd.f32 %v2066, %v2224
      %2226 = vmatmul.bf16.gmra.mxu0 %v1610
      %v2227 = vpop.f32.mrf.mxu0
      %v2228 = vadd.f32 %v2069, %v2227
      %v2229 = vpop.f32.mrf.mxu0
      %v2230 = vadd.f32 %v2071, %v2229
      %2231 = vmatmul.bf16.gmra.mxu0 %v1613
      %v2232 = vpop.f32.mrf.mxu0
      %v2233 = vadd.f32 %v2074, %v2232
      %v2234 = vpop.f32.mrf.mxu0
      %v2235 = vadd.f32 %v2076, %v2234
      %2236 = vmatmul.bf16.gmra.mxu0 %v1616
      %v2237 = vpop.f32.mrf.mxu0
      %v2238 = vadd.f32 %v2079, %v2237
      %v2239 = vpop.f32.mrf.mxu0
      %v2240 = vadd.f32 %v2081, %v2239
      %2241 = vmatmul.bf16.gmra.mxu0 %v1619
      %v2242 = vpop.f32.mrf.mxu0
      %v2243 = vadd.f32 %v2084, %v2242
      %v2244 = vpop.f32.mrf.mxu0
      %v2245 = vadd.f32 %v2086, %v2244
      %2246 = vmatmul.bf16.gmra.mxu0 %v1622
      %v2247 = vpop.f32.mrf.mxu0
      %v2248 = vadd.f32 %v2089, %v2247
      %v2249 = vpop.f32.mrf.mxu0
      %v2250 = vadd.f32 %v2091, %v2249
      %2251 = vmatmul.bf16.gmra.mxu0 %v1625
      %v2252 = vpop.f32.mrf.mxu0
      %v2253 = vadd.f32 %v2094, %v2252
      %v2254 = vpop.f32.mrf.mxu0
      %v2255 = vadd.f32 %v2096, %v2254
      %2256 = vmatmul.bf16.gmra.mxu0 %v1628
      %v2257 = vpop.f32.mrf.mxu0
      %v2258 = vadd.f32 %v2099, %v2257
      %v2259 = vpop.f32.mrf.mxu0
      %v2260 = vadd.f32 %v2101, %v2259
      %2261 = vmatmul.bf16.gmra.mxu0 %v1631
      %v2262 = vpop.f32.mrf.mxu0
      %v2263 = vadd.f32 %v2104, %v2262
      %v2264 = vpop.f32.mrf.mxu0
      %v2265 = vadd.f32 %v2106, %v2264
      %2266 = vmatmul.bf16.gmra.mxu0 %v1634
      %v2267 = vpop.f32.mrf.mxu0
      %v2268 = vadd.f32 %v2109, %v2267
      %v2269 = vpop.f32.mrf.mxu0
      %v2270 = vadd.f32 %v2111, %v2269
      %2271 = vdwg.mxu0
      %2272 = vst [vmem:[%s231] sm:$0xff] %v1805
      %2273 = vst.msk [vmem:[%s231 + $0x8] sm:$0xff] %vm274, %v2123
      %2274 = vst [vmem:[%s231 + $0x10] sm:$0xff] %v1807
      %2275 = vst.msk [vmem:[%s231 + $0x18] sm:$0xff] %vm274, %v2125
      %2276 = vst [vmem:[%s231 + $0x20] sm:$0xff] %v1810
      %2277 = vst.msk [vmem:[%s231 + $0x28] sm:$0xff] %vm274, %v2128
      %2278 = vst [vmem:[%s231 + $0x30] sm:$0xff] %v1812
      %2279 = vst.msk [vmem:[%s231 + $0x38] sm:$0xff] %vm274, %v2130
      %2280 = vst [vmem:[%s231 + $0x40] sm:$0xff] %v1815
      %2281 = vst.msk [vmem:[%s231 + $0x48] sm:$0xff] %vm274, %v2133
      %2282 = vst [vmem:[%s231 + $0x50] sm:$0xff] %v1817
      %2283 = vst.msk [vmem:[%s231 + $0x58] sm:$0xff] %vm274, %v2135
      %2284 = vst [vmem:[%s231 + $0x60] sm:$0xff] %v1820
      %2285 = vst.msk [vmem:[%s231 + $0x68] sm:$0xff] %vm274, %v2138
      %2286 = vst [vmem:[%s231 + $0x70] sm:$0xff] %v1822
      %2287 = vst.msk [vmem:[%s231 + $0x78] sm:$0xff] %vm274, %v2140
      %2288 = vst [vmem:[%s231 + $0x80] sm:$0xff] %v1825
      %2289 = vst.msk [vmem:[%s231 + $0x88] sm:$0xff] %vm274, %v2143
      %2290 = vst [vmem:[%s231 + $0x90] sm:$0xff] %v1827
      %2291 = vst.msk [vmem:[%s231 + $0x98] sm:$0xff] %vm274, %v2145
      %2292 = vst [vmem:[%s231 + $0xa0] sm:$0xff] %v1830
      %2293 = vst.msk [vmem:[%s231 + $0xa8] sm:$0xff] %vm274, %v2148
      %2294 = vst [vmem:[%s231 + $0xb0] sm:$0xff] %v1832
      %2295 = vst.msk [vmem:[%s231 + $0xb8] sm:$0xff] %vm274, %v2150
      %2296 = vst [vmem:[%s231 + $0xc0] sm:$0xff] %v1835
      %2297 = vst.msk [vmem:[%s231 + $0xc8] sm:$0xff] %vm274, %v2153
      %2298 = vst [vmem:[%s231 + $0xd0] sm:$0xff] %v1837
      %2299 = vst.msk [vmem:[%s231 + $0xd8] sm:$0xff] %vm274, %v2155
      %2300 = vst [vmem:[%s231 + $0xe0] sm:$0xff] %v1840
      %2301 = vst.msk [vmem:[%s231 + $0xe8] sm:$0xff] %vm274, %v2158
      %2302 = vst [vmem:[%s231 + $0xf0] sm:$0xff] %v1842
      %2303 = vst.msk [vmem:[%s231 + $0xf8] sm:$0xff] %vm274, %v2160
      %2304 = vst [vmem:[%s231 + $0x100] sm:$0xff] %v1845
      %2305 = vst.msk [vmem:[%s231 + $0x108] sm:$0xff] %vm274, %v2163
      %2306 = vst [vmem:[%s231 + $0x110] sm:$0xff] %v1847
      %2307 = vst.msk [vmem:[%s231 + $0x118] sm:$0xff] %vm274, %v2165
      %2308 = vst [vmem:[%s231 + $0x120] sm:$0xff] %v1850
      %2309 = vst.msk [vmem:[%s231 + $0x128] sm:$0xff] %vm274, %v2168
      %2310 = vst [vmem:[%s231 + $0x130] sm:$0xff] %v1852
      %2311 = vst.msk [vmem:[%s231 + $0x138] sm:$0xff] %vm274, %v2170
      %2312 = vst [vmem:[%s231 + $0x140] sm:$0xff] %v1855
      %2313 = vst.msk [vmem:[%s231 + $0x148] sm:$0xff] %vm274, %v2173
      %2314 = vst [vmem:[%s231 + $0x150] sm:$0xff] %v1857
      %2315 = vst.msk [vmem:[%s231 + $0x158] sm:$0xff] %vm274, %v2175
      %2316 = vst [vmem:[%s231 + $0x160] sm:$0xff] %v1860
      %2317 = vst.msk [vmem:[%s231 + $0x168] sm:$0xff] %vm274, %v2178
      %2318 = vst [vmem:[%s231 + $0x170] sm:$0xff] %v1862
      %2319 = vst.msk [vmem:[%s231 + $0x178] sm:$0xff] %vm274, %v2180
      %2320 = vst [vmem:[%s231 + $0x180] sm:$0xff] %v1865
      %2321 = vst.msk [vmem:[%s231 + $0x188] sm:$0xff] %vm274, %v2183
      %2322 = vst [vmem:[%s231 + $0x190] sm:$0xff] %v1867
      %2323 = vst.msk [vmem:[%s231 + $0x198] sm:$0xff] %vm274, %v2185
      %2324 = vst [vmem:[%s231 + $0x1a0] sm:$0xff] %v1870
      %2325 = vst.msk [vmem:[%s231 + $0x1a8] sm:$0xff] %vm274, %v2188
      %2326 = vst [vmem:[%s231 + $0x1b0] sm:$0xff] %v1872
      %2327 = vst.msk [vmem:[%s231 + $0x1b8] sm:$0xff] %vm274, %v2190
      %2328 = vst [vmem:[%s231 + $0x1c0] sm:$0xff] %v1875
      %2329 = vst.msk [vmem:[%s231 + $0x1c8] sm:$0xff] %vm274, %v2193
      %2330 = vst [vmem:[%s231 + $0x1d0] sm:$0xff] %v1877
      %2331 = vst.msk [vmem:[%s231 + $0x1d8] sm:$0xff] %vm274, %v2195
      %2332 = vst [vmem:[%s231 + $0x1e0] sm:$0xff] %v1880
      %2333 = vst.msk [vmem:[%s231 + $0x1e8] sm:$0xff] %vm274, %v2198
      %2334 = vst [vmem:[%s231 + $0x1f0] sm:$0xff] %v1882
      %2335 = vst.msk [vmem:[%s231 + $0x1f8] sm:$0xff] %vm274, %v2200
      %2336 = vst [vmem:[%s231 + $0x200] sm:$0xff] %v1885
      %2337 = vst.msk [vmem:[%s231 + $0x208] sm:$0xff] %vm274, %v2203
      %2338 = vst [vmem:[%s231 + $0x210] sm:$0xff] %v1887
      %2339 = vst.msk [vmem:[%s231 + $0x218] sm:$0xff] %vm274, %v2205
      %2340 = vst [vmem:[%s231 + $0x220] sm:$0xff] %v1890
      %2341 = vst.msk [vmem:[%s231 + $0x228] sm:$0xff] %vm274, %v2208
      %2342 = vst [vmem:[%s231 + $0x230] sm:$0xff] %v1892
      %2343 = vst.msk [vmem:[%s231 + $0x238] sm:$0xff] %vm274, %v2210
      %2344 = vst [vmem:[%s231 + $0x240] sm:$0xff] %v1895
      %2345 = vst.msk [vmem:[%s231 + $0x248] sm:$0xff] %vm274, %v2213
      %2346 = vst [vmem:[%s231 + $0x250] sm:$0xff] %v1897
      %2347 = vst.msk [vmem:[%s231 + $0x258] sm:$0xff] %vm274, %v2215
      %2348 = vst [vmem:[%s231 + $0x260] sm:$0xff] %v1900
      %2349 = vst.msk [vmem:[%s231 + $0x268] sm:$0xff] %vm274, %v2218
      %2350 = vst [vmem:[%s231 + $0x270] sm:$0xff] %v1902
      %2351 = vst.msk [vmem:[%s231 + $0x278] sm:$0xff] %vm274, %v2220
      %2352 = vst [vmem:[%s231 + $0x280] sm:$0xff] %v1905
      %2353 = vst.msk [vmem:[%s231 + $0x288] sm:$0xff] %vm274, %v2223
      %2354 = vst [vmem:[%s231 + $0x290] sm:$0xff] %v1907
      %2355 = vst.msk [vmem:[%s231 + $0x298] sm:$0xff] %vm274, %v2225
      %2356 = vst [vmem:[%s231 + $0x2a0] sm:$0xff] %v1910
      %2357 = vst.msk [vmem:[%s231 + $0x2a8] sm:$0xff] %vm274, %v2228
      %2358 = vst [vmem:[%s231 + $0x2b0] sm:$0xff] %v1912
      %2359 = vst.msk [vmem:[%s231 + $0x2b8] sm:$0xff] %vm274, %v2230
      %2360 = vst [vmem:[%s231 + $0x2c0] sm:$0xff] %v1915
      %2361 = vst.msk [vmem:[%s231 + $0x2c8] sm:$0xff] %vm274, %v2233
      %2362 = vst [vmem:[%s231 + $0x2d0] sm:$0xff] %v1917
      %2363 = vst.msk [vmem:[%s231 + $0x2d8] sm:$0xff] %vm274, %v2235
      %2364 = vst [vmem:[%s231 + $0x2e0] sm:$0xff] %v1920
      %2365 = vst.msk [vmem:[%s231 + $0x2e8] sm:$0xff] %vm274, %v2238
      %2366 = vst [vmem:[%s231 + $0x2f0] sm:$0xff] %v1922
      %2367 = vst.msk [vmem:[%s231 + $0x2f8] sm:$0xff] %vm274, %v2240
      %2368 = vst [vmem:[%s231 + $0x300] sm:$0xff] %v1925
      %2369 = vst.msk [vmem:[%s231 + $0x308] sm:$0xff] %vm274, %v2243
      %2370 = vst [vmem:[%s231 + $0x310] sm:$0xff] %v1927
      %2371 = vst.msk [vmem:[%s231 + $0x318] sm:$0xff] %vm274, %v2245
      %2372 = vst [vmem:[%s231 + $0x320] sm:$0xff] %v1930
      %2373 = vst.msk [vmem:[%s231 + $0x328] sm:$0xff] %vm274, %v2248
      %2374 = vst [vmem:[%s231 + $0x330] sm:$0xff] %v1932
      %2375 = vst.msk [vmem:[%s231 + $0x338] sm:$0xff] %vm274, %v2250
      %2376 = vst [vmem:[%s231 + $0x340] sm:$0xff] %v1935
      %2377 = vst.msk [vmem:[%s231 + $0x348] sm:$0xff] %vm274, %v2253
      %2378 = vst [vmem:[%s231 + $0x350] sm:$0xff] %v1937
      %2379 = vst.msk [vmem:[%s231 + $0x358] sm:$0xff] %vm274, %v2255
      %2380 = vst [vmem:[%s231 + $0x360] sm:$0xff] %v1940
      %2381 = vst.msk [vmem:[%s231 + $0x368] sm:$0xff] %vm274, %v2258
      %2382 = vst [vmem:[%s231 + $0x370] sm:$0xff] %v1942
      %2383 = vst.msk [vmem:[%s231 + $0x378] sm:$0xff] %vm274, %v2260
      %2384 = vst [vmem:[%s231 + $0x380] sm:$0xff] %v1945
      %2385 = vst.msk [vmem:[%s231 + $0x388] sm:$0xff] %vm274, %v2263
      %2386 = vst [vmem:[%s231 + $0x390] sm:$0xff] %v1947
      %2387 = vst.msk [vmem:[%s231 + $0x398] sm:$0xff] %vm274, %v2265
      %2388 = vst [vmem:[%s231 + $0x3a0] sm:$0xff] %v1950
      %2389 = vst.msk [vmem:[%s231 + $0x3a8] sm:$0xff] %vm274, %v2268
      %2390 = vst [vmem:[%s231 + $0x3b0] sm:$0xff] %v1952
      %2391 = vst.msk [vmem:[%s231 + $0x3b8] sm:$0xff] %vm274, %v2270
      %s2392 = smul.u32 60, %s16
      %p2393 = scmp.lt.s32.totalorder %s2392, 119
      %s2394 = scalar_select %p2393, %s2392, 119
      %s2395 = smul.addr %s2394, 2
      %s2396 = smul.addr %s2395, 8
      %s2397 = scalar_lea.vmem %s5, %s2396
      // Predicated region
      $region41: #{bn_add_conv1x1.1} parent=39 // pred_check
        %p2398 = pneg %p144
      $region42: #{bn_add_conv1x1.1} parent=39 // pred_check_branch
        %2400 = sbr.rel (%p2398) target = $region44
      $region43: #{bn_add_conv1x1.1} parent=39 // pred_region
        %s2401 = smul.u32 60, %s16
      $region44: #{bn_add_conv1x1.1} parent=39 // pred_fallthru
        _
    $region40: #{bn_add_conv1x1.1} parent=5 // pred_fallthru
      _
    %p2402 = scmp.le.s32.totalorder 2, %s11
    // Predicated region
    $region45: #{bn_add_conv1x1.1} parent=5 // pred_check
      %p2403 = pneg %p2402
    $region46: #{bn_add_conv1x1.1} parent=5 // pred_check_branch
      %2405 = sbr.rel (%p2403) target = $region48
    $region47: #{bn_add_conv1x1.1} parent=5 // pred_region
      %s2406 = ssub.s32 %s11, 2
      // Predicated region
      $region49: #{bn_add_conv1x1.1} parent=47 // pred_check
        %p2407 = pneg %p150
      $region50: #{bn_add_conv1x1.1} parent=47 // pred_check_branch
        %2409 = sbr.rel (%p2407) target = $region52
      $region51: #{bn_add_conv1x1.1} parent=47 // pred_region
        %s2410 = smul.u32 60, %s17
        %p2411 = scmp.lt.s32.totalorder %s2410, 119
        %s2412 = scalar_select %p2411, %s2410, 119
        %s2413 = smul.addr %s2412, 2
        %s2414 = smul.addr %s2413, 8
        %s2415 = scalar_lea.vmem %s5, %s2414
      $region52: #{bn_add_conv1x1.1} parent=47 // pred_fallthru
        _
    $region48: #{bn_add_conv1x1.1} parent=5 // pred_fallthru
      _
  $region6: #{bn_add_conv1x1.1} parent=0 // loop_footer
    %s15 = sadd.s32 1, %s11
  $region7: #{bn_add_conv1x1.1} parent=0 // loop_footer_branch
    %10 = sbr.rel target = $region3
  $region8: #{bn_add_conv1x1.1} parent=0 // loop_exit
    _

</llo_original>
